<compile_context>
chip_gen: v5e
topology: v5e:2x2
jax: 0.10.0
libtpu: 0.0.40
codegen_flags: <defaults>
</compile_context>

<pallas_src>
import jax
import jax.numpy as jnp
from jax.experimental import pallas as pl
from jax.experimental.pallas import tpu as pltpu


# ---------------------------------------------------------------------------
# Fused forward kernel (single invocation, everything VMEM-resident)
# ---------------------------------------------------------------------------
def _captioner_kernel(x_ref, ca_ref, w_img_ref, b_img_ref,
                      w_ih_ref, w_hh_ref, b_lstm_ref,
                      w_out_ref, b_out_ref, o_ref, hs_ref):
    """Shapes (all float32):
       x_ref      (B, F)          flattened image pixels
       ca_ref     (T*B, E)        time-major-flattened caption embeddings
       w_img_ref  (F, E), b_img_ref (1, E)            folded backbone + fc
       w_ih_ref   (E, 4H), w_hh_ref (H, 4H), b_lstm_ref (1, 4H)  (gate order i,f,g,o)
       w_out_ref  (H, V), b_out_ref (1, V)
       o_ref      ((T+1)*B, V)    time-major-flattened logits
       hs_ref     ((T+1)*B, H)    VMEM scratch for per-step hidden states
    """
    B = x_ref.shape[0]
    H = w_hh_ref.shape[0]
    TB = hs_ref.shape[0]          # (T+1) * B
    T1 = TB // B                  # T + 1

    # Hoist weight loads out of the unrolled loop.
    w_ih = w_ih_ref[...]
    w_hh = w_hh_ref[...]
    b_lstm = b_lstm_ref[...]

    # ---- image embedding (folded frozen backbone + fc):  (B, F) @ (F, E) ----
    im_emb = (jnp.dot(x_ref[...], w_img_ref[...],
                      preferred_element_type=jnp.float32) + b_img_ref[...])

    # ---- hoisted input-side gate projections (no recurrent dependency) ----
    g_im = jnp.dot(im_emb, w_ih, preferred_element_type=jnp.float32) + b_lstm       # (B, 4H)
    g_ca = jnp.dot(ca_ref[...], w_ih, preferred_element_type=jnp.float32) + b_lstm  # (T*B, 4H)

    # ---- recurrence (statically unrolled); only h @ W_hh is serial ----
    h = jnp.zeros((B, H), jnp.float32)
    c = jnp.zeros((B, H), jnp.float32)
    for t in range(T1):
        g_x = g_im if t == 0 else g_ca[(t - 1) * B:t * B, :]
        g = g_x + jnp.dot(h, w_hh, preferred_element_type=jnp.float32)   # (B, 4H)
        i_g = jax.nn.sigmoid(g[:, 0 * H:1 * H])
        f_g = jax.nn.sigmoid(g[:, 1 * H:2 * H])
        g_g = jnp.tanh(g[:, 2 * H:3 * H])
        o_g = jax.nn.sigmoid(g[:, 3 * H:4 * H])
        c = f_g * c + i_g * g_g
        h = o_g * jnp.tanh(c)
        hs_ref[t * B:(t + 1) * B, :] = h          # stage hidden state (VMEM scratch)

    # ---- single batched output projection + one wide store ----
    o_ref[...] = (jnp.dot(hs_ref[...], w_out_ref[...],
                          preferred_element_type=jnp.float32) + b_out_ref[...])


# ---------------------------------------------------------------------------
# Wrapper (mirrors Model.forward: batch_first in / batch_first out)
# ---------------------------------------------------------------------------
def captioner_forward(params, images, captions):
    # images: (B, 3, 16, 16) NCHW f32 ; captions: (B, T) int32
    B = images.shape[0]
    T = captions.shape[1]
    V = params["w_out"].shape[1]
    H = params["w_hh_t"].shape[0]

    x_flat = images.reshape(B, -1)                                   # (B, F)
    # caption-embedding gather (tiny XLA glue), time-major flattened: row = t*B + b
    ca_tm = jnp.take(params["embed"],
                     jnp.transpose(captions).reshape(-1), axis=0)    # (T*B, E)

    out_flat = pl.pallas_call(
        _captioner_kernel,
        out_shape=jax.ShapeDtypeStruct(((T + 1) * B, V), jnp.float32),
        scratch_shapes=[pltpu.VMEM(((T + 1) * B, H), jnp.float32)],
    )(x_flat, ca_tm,
      params["w_img"], params["b_img"],
      params["w_ih_t"], params["w_hh_t"], params["b_lstm"],
      params["w_out"], params["b_out"])

    # (T+1)*B rows, time-major -> (B, T+1, V)
    return jnp.transpose(out_flat.reshape(T + 1, B, V), (1, 0, 2))


forward = jax.jit(captioner_forward)


# ---------------------------------------------------------------------------
# Parameters (backbone folded offline into the fc weight)
# ---------------------------------------------------------------------------
def make_params(key, *, img_flat, feat_dim, embedding_size, hidden_size,
                vocab_size):
    ks = jax.random.split(key, 8)
    scale = lambda fan_in: 1.0 / jnp.sqrt(jnp.float32(fan_in))

    # frozen backbone stand-in: flattened pixels -> 2048 features (never trained)
    w_backbone = jax.random.normal(ks[0], (img_flat, feat_dim), jnp.float32) * scale(img_flat)
    b_backbone = jnp.zeros((1, feat_dim), jnp.float32)
    # resnet.fc : Linear(2048, embedding_size)
    w_fc = jax.random.normal(ks[1], (feat_dim, embedding_size), jnp.float32) * scale(feat_dim)
    b_fc = jax.random.normal(ks[2], (1, embedding_size), jnp.float32) * scale(feat_dim)
    # offline fold: one (F, E) weight instead of (F,2048)+(2048,E) at runtime
    w_img = w_backbone @ w_fc
    b_img = b_backbone @ w_fc + b_fc

    return {
        "w_img": w_img,                                             # (F, E)
        "b_img": b_img,                                             # (1, E)
        "embed": jax.random.normal(ks[3], (vocab_size, embedding_size), jnp.float32),
        # LSTM(embedding_size, hidden_size), stored transposed: (E,4H) / (H,4H)
        "w_ih_t": jax.random.normal(ks[4], (embedding_size, 4 * hidden_size), jnp.float32) * scale(hidden_size),
        "w_hh_t": jax.random.normal(ks[5], (hidden_size, 4 * hidden_size), jnp.float32) * scale(hidden_size),
        # single combined bias == PyTorch b_ih + b_hh
        "b_lstm": jax.random.normal(ks[6], (1, 4 * hidden_size), jnp.float32) * scale(hidden_size),
        # output : Linear(hidden_size, vocab_size)
        "w_out": jax.random.normal(ks[7], (hidden_size, vocab_size), jnp.float32) * scale(hidden_size),
        "b_out": jnp.zeros((1, vocab_size), jnp.float32),
    }


# ---------------------------------------------------------------------------
# Pure-JAX reference (same math, no Pallas) for a sanity check
# ---------------------------------------------------------------------------
def _reference_forward(params, images, captions):
    B = images.shape[0]
    T = captions.shape[1]
    H = params["w_hh_t"].shape[0]
    x = images.reshape(B, -1)
    im = x @ params["w_img"] + params["b_img"]                       # (B, E)
    ca = jnp.take(params["embed"], captions, axis=0)                 # (B, T, E)
    comb = jnp.concatenate([im[:, None, :], ca], axis=1)             # (B, T+1, E)
    h = jnp.zeros((B, H), jnp.float32)
    c = jnp.zeros((B, H), jnp.float32)
    outs = []
    for t in range(T + 1):
        g = comb[:, t, :] @ params["w_ih_t"] + h @ params["w_hh_t"] + params["b_lstm"]
        i_g = jax.nn.sigmoid(g[:, :H])
        f_g = jax.nn.sigmoid(g[:, H:2 * H])
        g_g = jnp.tanh(g[:, 2 * H:3 * H])
        o_g = jax.nn.sigmoid(g[:, 3 * H:])
        c = f_g * c + i_g * g_g
        h = o_g * jnp.tanh(c)
        outs.append(h @ params["w_out"] + params["b_out"])
    return jnp.stack(outs, axis=1)                                   # (B, T+1, V)


if __name__ == "__main__":
    B, C, Himg, Wimg = 2, 3, 16, 16
    T = 8
    vocab_size = 64
    embedding_size = 32
    hidden_size = 32
    feat_dim = 2048

    key = jax.random.PRNGKey(0)
    k_img, k_cap, k_par = jax.random.split(key, 3)

    images = jax.random.normal(k_img, (B, C, Himg, Wimg), jnp.float32)
    captions = jax.random.randint(k_cap, (B, T), 0, vocab_size, jnp.int32)

    params = make_params(
        k_par,
        img_flat=C * Himg * Wimg,
        feat_dim=feat_dim,
        embedding_size=embedding_size,
        hidden_size=hidden_size,
        vocab_size=vocab_size,
    )

    out = forward(params, images, captions)
    jax.block_until_ready(out)
    assert out.shape == (B, T + 1, vocab_size), out.shape

    ref = _reference_forward(params, images, captions)
    err = float(jnp.max(jnp.abs(out - ref)))
    assert err < 5e-2, f"max abs err vs reference: {err}"
    print("KERNEL_OK")
</pallas_src>

<mosaic_0001>
module attributes {stable_mosaic.version = 11 : i64} {
  func.func @_captioner_kernel(%arg0: memref<2x768xf32, #tpu.memory_space<vmem>>, %arg1: memref<16x32xf32, #tpu.memory_space<vmem>>, %arg2: memref<768x32xf32, #tpu.memory_space<vmem>>, %arg3: memref<1x32xf32, #tpu.memory_space<vmem>>, %arg4: memref<32x128xf32, #tpu.memory_space<vmem>>, %arg5: memref<32x128xf32, #tpu.memory_space<vmem>>, %arg6: memref<1x128xf32, #tpu.memory_space<vmem>>, %arg7: memref<32x64xf32, #tpu.memory_space<vmem>>, %arg8: memref<1x64xf32, #tpu.memory_space<vmem>>, %arg9: memref<18x64xf32, #tpu.memory_space<vmem>>, %arg10: memref<18x32xf32, #tpu.memory_space<vmem>>) attributes {dimension_semantics = [], scalar_prefetch = 0 : i64, scratch_operands = 1 : i64, tpu.core_type = #tpu.core_type<tc>} {
    %c0 = arith.constant 0 : index
    %c0_0 = arith.constant 0 : index
    %0 = vector.load %arg4[%c0, %c0_0] : memref<32x128xf32, #tpu.memory_space<vmem>>, vector<32x128xf32>
    %c0_1 = arith.constant 0 : index
    %c0_2 = arith.constant 0 : index
    %1 = vector.load %arg5[%c0_1, %c0_2] : memref<32x128xf32, #tpu.memory_space<vmem>>, vector<32x128xf32>
    %c0_3 = arith.constant 0 : index
    %c0_4 = arith.constant 0 : index
    %2 = vector.load %arg6[%c0_3, %c0_4] : memref<1x128xf32, #tpu.memory_space<vmem>>, vector<1x128xf32>
    %c0_5 = arith.constant 0 : index
    %c0_6 = arith.constant 0 : index
    %3 = vector.load %arg0[%c0_5, %c0_6] : memref<2x768xf32, #tpu.memory_space<vmem>>, vector<2x768xf32>
    %c0_7 = arith.constant 0 : index
    %c0_8 = arith.constant 0 : index
    %4 = vector.load %arg2[%c0_7, %c0_8] : memref<768x32xf32, #tpu.memory_space<vmem>>, vector<768x32xf32>
    %cst = arith.constant dense<0.000000e+00> : vector<2x32xf32>
    %5 = tpu.matmul %3, %4, %cst {dimension_numbers = #tpu.dot_dimension_numbers<[1], [0], [0], [1], [0, 0, 1, 1], [], []>} : vector<2x768xf32>, vector<768x32xf32>, vector<2x32xf32> -> vector<2x32xf32>
    %c0_9 = arith.constant 0 : index
    %c0_10 = arith.constant 0 : index
    %6 = vector.load %arg3[%c0_9, %c0_10] : memref<1x32xf32, #tpu.memory_space<vmem>>, vector<1x32xf32>
    %7 = vector.broadcast %6 : vector<1x32xf32> to vector<2x32xf32>
    %8 = arith.addf %5, %7 : vector<2x32xf32>
    %cst_11 = arith.constant dense<0.000000e+00> : vector<2x128xf32>
    %9 = tpu.matmul %8, %0, %cst_11 {dimension_numbers = #tpu.dot_dimension_numbers<[1], [0], [0], [1], [0, 0, 1, 1], [], []>} : vector<2x32xf32>, vector<32x128xf32>, vector<2x128xf32> -> vector<2x128xf32>
    %10 = vector.broadcast %2 : vector<1x128xf32> to vector<2x128xf32>
    %11 = arith.addf %9, %10 : vector<2x128xf32>
    %c0_12 = arith.constant 0 : index
    %c0_13 = arith.constant 0 : index
    %12 = vector.load %arg1[%c0_12, %c0_13] : memref<16x32xf32, #tpu.memory_space<vmem>>, vector<16x32xf32>
    %cst_14 = arith.constant dense<0.000000e+00> : vector<16x128xf32>
    %13 = tpu.matmul %12, %0, %cst_14 {dimension_numbers = #tpu.dot_dimension_numbers<[1], [0], [0], [1], [0, 0, 1, 1], [], []>} : vector<16x32xf32>, vector<32x128xf32>, vector<16x128xf32> -> vector<16x128xf32>
    %14 = vector.broadcast %2 : vector<1x128xf32> to vector<16x128xf32>
    %15 = arith.addf %13, %14 : vector<16x128xf32>
    %cst_15 = arith.constant 0.000000e+00 : f32
    %16 = vector.broadcast %cst_15 : f32 to vector<2x32xf32>
    %cst_16 = arith.constant 0.000000e+00 : f32
    %17 = vector.broadcast %cst_16 : f32 to vector<2x32xf32>
    %cst_17 = arith.constant dense<0.000000e+00> : vector<2x128xf32>
    %18 = tpu.matmul %16, %1, %cst_17 {dimension_numbers = #tpu.dot_dimension_numbers<[1], [0], [0], [1], [0, 0, 1, 1], [], []>} : vector<2x32xf32>, vector<32x128xf32>, vector<2x128xf32> -> vector<2x128xf32>
    %19 = arith.addf %11, %18 : vector<2x128xf32>
    %20 = vector.extract_strided_slice %19 {offsets = [0, 0], sizes = [2, 32], strides = [1, 1]} : vector<2x128xf32> to vector<2x32xf32>
    %21 = arith.negf %20 : vector<2x32xf32>
    %22 = math.exp %21 : vector<2x32xf32>
    %cst_18 = arith.constant 1.000000e+00 : f32
    %23 = vector.broadcast %cst_18 : f32 to vector<2x32xf32>
    %24 = arith.addf %23, %22 : vector<2x32xf32>
    %25 = arith.divf %23, %24 : vector<2x32xf32>
    %26 = vector.extract_strided_slice %19 {offsets = [0, 32], sizes = [2, 32], strides = [1, 1]} : vector<2x128xf32> to vector<2x32xf32>
    %27 = arith.negf %26 : vector<2x32xf32>
    %28 = math.exp %27 : vector<2x32xf32>
    %cst_19 = arith.constant 1.000000e+00 : f32
    %29 = vector.broadcast %cst_19 : f32 to vector<2x32xf32>
    %30 = arith.addf %29, %28 : vector<2x32xf32>
    %31 = arith.divf %29, %30 : vector<2x32xf32>
    %32 = vector.extract_strided_slice %19 {offsets = [0, 64], sizes = [2, 32], strides = [1, 1]} : vector<2x128xf32> to vector<2x32xf32>
    %33 = math.tanh %32 : vector<2x32xf32>
    %34 = vector.extract_strided_slice %19 {offsets = [0, 96], sizes = [2, 32], strides = [1, 1]} : vector<2x128xf32> to vector<2x32xf32>
    %35 = arith.negf %34 : vector<2x32xf32>
    %36 = math.exp %35 : vector<2x32xf32>
    %cst_20 = arith.constant 1.000000e+00 : f32
    %37 = vector.broadcast %cst_20 : f32 to vector<2x32xf32>
    %38 = arith.addf %37, %36 : vector<2x32xf32>
    %39 = arith.divf %37, %38 : vector<2x32xf32>
    %40 = arith.mulf %31, %17 : vector<2x32xf32>
    %41 = arith.mulf %25, %33 : vector<2x32xf32>
    %42 = arith.addf %40, %41 : vector<2x32xf32>
    %43 = math.tanh %42 : vector<2x32xf32>
    %44 = arith.mulf %39, %43 : vector<2x32xf32>
    %c0_21 = arith.constant 0 : index
    %c0_22 = arith.constant 0 : index
    %45 = vector.load %arg10[%c0_21, %c0_22] : memref<18x32xf32, #tpu.memory_space<vmem>>, vector<2x32xf32>
    tpu.vector_store %arg10[%c0_21, %c0_22], %44 {strides = array<i32>} : memref<18x32xf32, #tpu.memory_space<vmem>>, vector<2x32xf32>,
    %46 = vector.extract_strided_slice %15 {offsets = [0, 0], sizes = [2, 128], strides = [1, 1]} : vector<16x128xf32> to vector<2x128xf32>
    %cst_23 = arith.constant dense<0.000000e+00> : vector<2x128xf32>
    %47 = tpu.matmul %44, %1, %cst_23 {dimension_numbers = #tpu.dot_dimension_numbers<[1], [0], [0], [1], [0, 0, 1, 1], [], []>} : vector<2x32xf32>, vector<32x128xf32>, vector<2x128xf32> -> vector<2x128xf32>
    %48 = arith.addf %46, %47 : vector<2x128xf32>
    %49 = vector.extract_strided_slice %48 {offsets = [0, 0], sizes = [2, 32], strides = [1, 1]} : vector<2x128xf32> to vector<2x32xf32>
    %50 = arith.negf %49 : vector<2x32xf32>
    %51 = math.exp %50 : vector<2x32xf32>
    %cst_24 = arith.constant 1.000000e+00 : f32
    %52 = vector.broadcast %cst_24 : f32 to vector<2x32xf32>
    %53 = arith.addf %52, %51 : vector<2x32xf32>
    %54 = arith.divf %52, %53 : vector<2x32xf32>
    %55 = vector.extract_strided_slice %48 {offsets = [0, 32], sizes = [2, 32], strides = [1, 1]} : vector<2x128xf32> to vector<2x32xf32>
    %56 = arith.negf %55 : vector<2x32xf32>
    %57 = math.exp %56 : vector<2x32xf32>
    %cst_25 = arith.constant 1.000000e+00 : f32
    %58 = vector.broadcast %cst_25 : f32 to vector<2x32xf32>
    %59 = arith.addf %58, %57 : vector<2x32xf32>
    %60 = arith.divf %58, %59 : vector<2x32xf32>
    %61 = vector.extract_strided_slice %48 {offsets = [0, 64], sizes = [2, 32], strides = [1, 1]} : vector<2x128xf32> to vector<2x32xf32>
    %62 = math.tanh %61 : vector<2x32xf32>
    %63 = vector.extract_strided_slice %48 {offsets = [0, 96], sizes = [2, 32], strides = [1, 1]} : vector<2x128xf32> to vector<2x32xf32>
    %64 = arith.negf %63 : vector<2x32xf32>
    %65 = math.exp %64 : vector<2x32xf32>
    %cst_26 = arith.constant 1.000000e+00 : f32
    %66 = vector.broadcast %cst_26 : f32 to vector<2x32xf32>
    %67 = arith.addf %66, %65 : vector<2x32xf32>
    %68 = arith.divf %66, %67 : vector<2x32xf32>
    %69 = arith.mulf %60, %42 : vector<2x32xf32>
    %70 = arith.mulf %54, %62 : vector<2x32xf32>
    %71 = arith.addf %69, %70 : vector<2x32xf32>
    %72 = math.tanh %71 : vector<2x32xf32>
    %73 = arith.mulf %68, %72 : vector<2x32xf32>
    %c2 = arith.constant 2 : index
    %c0_27 = arith.constant 0 : index
    %74 = vector.load %arg10[%c2, %c0_27] : memref<18x32xf32, #tpu.memory_space<vmem>>, vector<2x32xf32>
    tpu.vector_store %arg10[%c2, %c0_27], %73 {strides = array<i32>} : memref<18x32xf32, #tpu.memory_space<vmem>>, vector<2x32xf32>,
    %75 = vector.extract_strided_slice %15 {offsets = [2, 0], sizes = [2, 128], strides = [1, 1]} : vector<16x128xf32> to vector<2x128xf32>
    %cst_28 = arith.constant dense<0.000000e+00> : vector<2x128xf32>
    %76 = tpu.matmul %73, %1, %cst_28 {dimension_numbers = #tpu.dot_dimension_numbers<[1], [0], [0], [1], [0, 0, 1, 1], [], []>} : vector<2x32xf32>, vector<32x128xf32>, vector<2x128xf32> -> vector<2x128xf32>
    %77 = arith.addf %75, %76 : vector<2x128xf32>
    %78 = vector.extract_strided_slice %77 {offsets = [0, 0], sizes = [2, 32], strides = [1, 1]} : vector<2x128xf32> to vector<2x32xf32>
    %79 = arith.negf %78 : vector<2x32xf32>
    %80 = math.exp %79 : vector<2x32xf32>
    %cst_29 = arith.constant 1.000000e+00 : f32
    %81 = vector.broadcast %cst_29 : f32 to vector<2x32xf32>
    %82 = arith.addf %81, %80 : vector<2x32xf32>
    %83 = arith.divf %81, %82 : vector<2x32xf32>
    %84 = vector.extract_strided_slice %77 {offsets = [0, 32], sizes = [2, 32], strides = [1, 1]} : vector<2x128xf32> to vector<2x32xf32>
    %85 = arith.negf %84 : vector<2x32xf32>
    %86 = math.exp %85 : vector<2x32xf32>
    %cst_30 = arith.constant 1.000000e+00 : f32
    %87 = vector.broadcast %cst_30 : f32 to vector<2x32xf32>
    %88 = arith.addf %87, %86 : vector<2x32xf32>
    %89 = arith.divf %87, %88 : vector<2x32xf32>
    %90 = vector.extract_strided_slice %77 {offsets = [0, 64], sizes = [2, 32], strides = [1, 1]} : vector<2x128xf32> to vector<2x32xf32>
    %91 = math.tanh %90 : vector<2x32xf32>
    %92 = vector.extract_strided_slice %77 {offsets = [0, 96], sizes = [2, 32], strides = [1, 1]} : vector<2x128xf32> to vector<2x32xf32>
    %93 = arith.negf %92 : vector<2x32xf32>
    %94 = math.exp %93 : vector<2x32xf32>
    %cst_31 = arith.constant 1.000000e+00 : f32
    %95 = vector.broadcast %cst_31 : f32 to vector<2x32xf32>
    %96 = arith.addf %95, %94 : vector<2x32xf32>
    %97 = arith.divf %95, %96 : vector<2x32xf32>
    %98 = arith.mulf %89, %71 : vector<2x32xf32>
    %99 = arith.mulf %83, %91 : vector<2x32xf32>
    %100 = arith.addf %98, %99 : vector<2x32xf32>
    %101 = math.tanh %100 : vector<2x32xf32>
    %102 = arith.mulf %97, %101 : vector<2x32xf32>
    %c4 = arith.constant 4 : index
    %c0_32 = arith.constant 0 : index
    %103 = vector.load %arg10[%c4, %c0_32] : memref<18x32xf32, #tpu.memory_space<vmem>>, vector<2x32xf32>
    tpu.vector_store %arg10[%c4, %c0_32], %102 {strides = array<i32>} : memref<18x32xf32, #tpu.memory_space<vmem>>, vector<2x32xf32>,
    %104 = vector.extract_strided_slice %15 {offsets = [4, 0], sizes = [2, 128], strides = [1, 1]} : vector<16x128xf32> to vector<2x128xf32>
    %cst_33 = arith.constant dense<0.000000e+00> : vector<2x128xf32>
    %105 = tpu.matmul %102, %1, %cst_33 {dimension_numbers = #tpu.dot_dimension_numbers<[1], [0], [0], [1], [0, 0, 1, 1], [], []>} : vector<2x32xf32>, vector<32x128xf32>, vector<2x128xf32> -> vector<2x128xf32>
    %106 = arith.addf %104, %105 : vector<2x128xf32>
    %107 = vector.extract_strided_slice %106 {offsets = [0, 0], sizes = [2, 32], strides = [1, 1]} : vector<2x128xf32> to vector<2x32xf32>
    %108 = arith.negf %107 : vector<2x32xf32>
    %109 = math.exp %108 : vector<2x32xf32>
    %cst_34 = arith.constant 1.000000e+00 : f32
    %110 = vector.broadcast %cst_34 : f32 to vector<2x32xf32>
    %111 = arith.addf %110, %109 : vector<2x32xf32>
    %112 = arith.divf %110, %111 : vector<2x32xf32>
    %113 = vector.extract_strided_slice %106 {offsets = [0, 32], sizes = [2, 32], strides = [1, 1]} : vector<2x128xf32> to vector<2x32xf32>
    %114 = arith.negf %113 : vector<2x32xf32>
    %115 = math.exp %114 : vector<2x32xf32>
    %cst_35 = arith.constant 1.000000e+00 : f32
    %116 = vector.broadcast %cst_35 : f32 to vector<2x32xf32>
    %117 = arith.addf %116, %115 : vector<2x32xf32>
    %118 = arith.divf %116, %117 : vector<2x32xf32>
    %119 = vector.extract_strided_slice %106 {offsets = [0, 64], sizes = [2, 32], strides = [1, 1]} : vector<2x128xf32> to vector<2x32xf32>
    %120 = math.tanh %119 : vector<2x32xf32>
    %121 = vector.extract_strided_slice %106 {offsets = [0, 96], sizes = [2, 32], strides = [1, 1]} : vector<2x128xf32> to vector<2x32xf32>
    %122 = arith.negf %121 : vector<2x32xf32>
    %123 = math.exp %122 : vector<2x32xf32>
    %cst_36 = arith.constant 1.000000e+00 : f32
    %124 = vector.broadcast %cst_36 : f32 to vector<2x32xf32>
    %125 = arith.addf %124, %123 : vector<2x32xf32>
    %126 = arith.divf %124, %125 : vector<2x32xf32>
    %127 = arith.mulf %118, %100 : vector<2x32xf32>
    %128 = arith.mulf %112, %120 : vector<2x32xf32>
    %129 = arith.addf %127, %128 : vector<2x32xf32>
    %130 = math.tanh %129 : vector<2x32xf32>
    %131 = arith.mulf %126, %130 : vector<2x32xf32>
    %c6 = arith.constant 6 : index
    %c0_37 = arith.constant 0 : index
    %132 = vector.load %arg10[%c6, %c0_37] : memref<18x32xf32, #tpu.memory_space<vmem>>, vector<2x32xf32>
    tpu.vector_store %arg10[%c6, %c0_37], %131 {strides = array<i32>} : memref<18x32xf32, #tpu.memory_space<vmem>>, vector<2x32xf32>,
    %133 = vector.extract_strided_slice %15 {offsets = [6, 0], sizes = [2, 128], strides = [1, 1]} : vector<16x128xf32> to vector<2x128xf32>
    %cst_38 = arith.constant dense<0.000000e+00> : vector<2x128xf32>
    %134 = tpu.matmul %131, %1, %cst_38 {dimension_numbers = #tpu.dot_dimension_numbers<[1], [0], [0], [1], [0, 0, 1, 1], [], []>} : vector<2x32xf32>, vector<32x128xf32>, vector<2x128xf32> -> vector<2x128xf32>
    %135 = arith.addf %133, %134 : vector<2x128xf32>
    %136 = vector.extract_strided_slice %135 {offsets = [0, 0], sizes = [2, 32], strides = [1, 1]} : vector<2x128xf32> to vector<2x32xf32>
    %137 = arith.negf %136 : vector<2x32xf32>
    %138 = math.exp %137 : vector<2x32xf32>
    %cst_39 = arith.constant 1.000000e+00 : f32
    %139 = vector.broadcast %cst_39 : f32 to vector<2x32xf32>
    %140 = arith.addf %139, %138 : vector<2x32xf32>
    %141 = arith.divf %139, %140 : vector<2x32xf32>
    %142 = vector.extract_strided_slice %135 {offsets = [0, 32], sizes = [2, 32], strides = [1, 1]} : vector<2x128xf32> to vector<2x32xf32>
    %143 = arith.negf %142 : vector<2x32xf32>
    %144 = math.exp %143 : vector<2x32xf32>
    %cst_40 = arith.constant 1.000000e+00 : f32
    %145 = vector.broadcast %cst_40 : f32 to vector<2x32xf32>
    %146 = arith.addf %145, %144 : vector<2x32xf32>
    %147 = arith.divf %145, %146 : vector<2x32xf32>
    %148 = vector.extract_strided_slice %135 {offsets = [0, 64], sizes = [2, 32], strides = [1, 1]} : vector<2x128xf32> to vector<2x32xf32>
    %149 = math.tanh %148 : vector<2x32xf32>
    %150 = vector.extract_strided_slice %135 {offsets = [0, 96], sizes = [2, 32], strides = [1, 1]} : vector<2x128xf32> to vector<2x32xf32>
    %151 = arith.negf %150 : vector<2x32xf32>
    %152 = math.exp %151 : vector<2x32xf32>
    %cst_41 = arith.constant 1.000000e+00 : f32
    %153 = vector.broadcast %cst_41 : f32 to vector<2x32xf32>
    %154 = arith.addf %153, %152 : vector<2x32xf32>
    %155 = arith.divf %153, %154 : vector<2x32xf32>
    %156 = arith.mulf %147, %129 : vector<2x32xf32>
    %157 = arith.mulf %141, %149 : vector<2x32xf32>
    %158 = arith.addf %156, %157 : vector<2x32xf32>
    %159 = math.tanh %158 : vector<2x32xf32>
    %160 = arith.mulf %155, %159 : vector<2x32xf32>
    %c8 = arith.constant 8 : index
    %c0_42 = arith.constant 0 : index
    %161 = vector.load %arg10[%c8, %c0_42] : memref<18x32xf32, #tpu.memory_space<vmem>>, vector<2x32xf32>
    tpu.vector_store %arg10[%c8, %c0_42], %160 {strides = array<i32>} : memref<18x32xf32, #tpu.memory_space<vmem>>, vector<2x32xf32>,
    %162 = vector.extract_strided_slice %15 {offsets = [8, 0], sizes = [2, 128], strides = [1, 1]} : vector<16x128xf32> to vector<2x128xf32>
    %cst_43 = arith.constant dense<0.000000e+00> : vector<2x128xf32>
    %163 = tpu.matmul %160, %1, %cst_43 {dimension_numbers = #tpu.dot_dimension_numbers<[1], [0], [0], [1], [0, 0, 1, 1], [], []>} : vector<2x32xf32>, vector<32x128xf32>, vector<2x128xf32> -> vector<2x128xf32>
    %164 = arith.addf %162, %163 : vector<2x128xf32>
    %165 = vector.extract_strided_slice %164 {offsets = [0, 0], sizes = [2, 32], strides = [1, 1]} : vector<2x128xf32> to vector<2x32xf32>
    %166 = arith.negf %165 : vector<2x32xf32>
    %167 = math.exp %166 : vector<2x32xf32>
    %cst_44 = arith.constant 1.000000e+00 : f32
    %168 = vector.broadcast %cst_44 : f32 to vector<2x32xf32>
    %169 = arith.addf %168, %167 : vector<2x32xf32>
    %170 = arith.divf %168, %169 : vector<2x32xf32>
    %171 = vector.extract_strided_slice %164 {offsets = [0, 32], sizes = [2, 32], strides = [1, 1]} : vector<2x128xf32> to vector<2x32xf32>
    %172 = arith.negf %171 : vector<2x32xf32>
    %173 = math.exp %172 : vector<2x32xf32>
    %cst_45 = arith.constant 1.000000e+00 : f32
    %174 = vector.broadcast %cst_45 : f32 to vector<2x32xf32>
    %175 = arith.addf %174, %173 : vector<2x32xf32>
    %176 = arith.divf %174, %175 : vector<2x32xf32>
    %177 = vector.extract_strided_slice %164 {offsets = [0, 64], sizes = [2, 32], strides = [1, 1]} : vector<2x128xf32> to vector<2x32xf32>
    %178 = math.tanh %177 : vector<2x32xf32>
    %179 = vector.extract_strided_slice %164 {offsets = [0, 96], sizes = [2, 32], strides = [1, 1]} : vector<2x128xf32> to vector<2x32xf32>
    %180 = arith.negf %179 : vector<2x32xf32>
    %181 = math.exp %180 : vector<2x32xf32>
    %cst_46 = arith.constant 1.000000e+00 : f32
    %182 = vector.broadcast %cst_46 : f32 to vector<2x32xf32>
    %183 = arith.addf %182, %181 : vector<2x32xf32>
    %184 = arith.divf %182, %183 : vector<2x32xf32>
    %185 = arith.mulf %176, %158 : vector<2x32xf32>
    %186 = arith.mulf %170, %178 : vector<2x32xf32>
    %187 = arith.addf %185, %186 : vector<2x32xf32>
    %188 = math.tanh %187 : vector<2x32xf32>
    %189 = arith.mulf %184, %188 : vector<2x32xf32>
    %c10 = arith.constant 10 : index
    %c0_47 = arith.constant 0 : index
    %190 = vector.load %arg10[%c10, %c0_47] : memref<18x32xf32, #tpu.memory_space<vmem>>, vector<2x32xf32>
    tpu.vector_store %arg10[%c10, %c0_47], %189 {strides = array<i32>} : memref<18x32xf32, #tpu.memory_space<vmem>>, vector<2x32xf32>,
    %191 = vector.extract_strided_slice %15 {offsets = [10, 0], sizes = [2, 128], strides = [1, 1]} : vector<16x128xf32> to vector<2x128xf32>
    %cst_48 = arith.constant dense<0.000000e+00> : vector<2x128xf32>
    %192 = tpu.matmul %189, %1, %cst_48 {dimension_numbers = #tpu.dot_dimension_numbers<[1], [0], [0], [1], [0, 0, 1, 1], [], []>} : vector<2x32xf32>, vector<32x128xf32>, vector<2x128xf32> -> vector<2x128xf32>
    %193 = arith.addf %191, %192 : vector<2x128xf32>
    %194 = vector.extract_strided_slice %193 {offsets = [0, 0], sizes = [2, 32], strides = [1, 1]} : vector<2x128xf32> to vector<2x32xf32>
    %195 = arith.negf %194 : vector<2x32xf32>
    %196 = math.exp %195 : vector<2x32xf32>
    %cst_49 = arith.constant 1.000000e+00 : f32
    %197 = vector.broadcast %cst_49 : f32 to vector<2x32xf32>
    %198 = arith.addf %197, %196 : vector<2x32xf32>
    %199 = arith.divf %197, %198 : vector<2x32xf32>
    %200 = vector.extract_strided_slice %193 {offsets = [0, 32], sizes = [2, 32], strides = [1, 1]} : vector<2x128xf32> to vector<2x32xf32>
    %201 = arith.negf %200 : vector<2x32xf32>
    %202 = math.exp %201 : vector<2x32xf32>
    %cst_50 = arith.constant 1.000000e+00 : f32
    %203 = vector.broadcast %cst_50 : f32 to vector<2x32xf32>
    %204 = arith.addf %203, %202 : vector<2x32xf32>
    %205 = arith.divf %203, %204 : vector<2x32xf32>
    %206 = vector.extract_strided_slice %193 {offsets = [0, 64], sizes = [2, 32], strides = [1, 1]} : vector<2x128xf32> to vector<2x32xf32>
    %207 = math.tanh %206 : vector<2x32xf32>
    %208 = vector.extract_strided_slice %193 {offsets = [0, 96], sizes = [2, 32], strides = [1, 1]} : vector<2x128xf32> to vector<2x32xf32>
    %209 = arith.negf %208 : vector<2x32xf32>
    %210 = math.exp %209 : vector<2x32xf32>
    %cst_51 = arith.constant 1.000000e+00 : f32
    %211 = vector.broadcast %cst_51 : f32 to vector<2x32xf32>
    %212 = arith.addf %211, %210 : vector<2x32xf32>
    %213 = arith.divf %211, %212 : vector<2x32xf32>
    %214 = arith.mulf %205, %187 : vector<2x32xf32>
    %215 = arith.mulf %199, %207 : vector<2x32xf32>
    %216 = arith.addf %214, %215 : vector<2x32xf32>
    %217 = math.tanh %216 : vector<2x32xf32>
    %218 = arith.mulf %213, %217 : vector<2x32xf32>
    %c12 = arith.constant 12 : index
    %c0_52 = arith.constant 0 : index
    %219 = vector.load %arg10[%c12, %c0_52] : memref<18x32xf32, #tpu.memory_space<vmem>>, vector<2x32xf32>
    tpu.vector_store %arg10[%c12, %c0_52], %218 {strides = array<i32>} : memref<18x32xf32, #tpu.memory_space<vmem>>, vector<2x32xf32>,
    %220 = vector.extract_strided_slice %15 {offsets = [12, 0], sizes = [2, 128], strides = [1, 1]} : vector<16x128xf32> to vector<2x128xf32>
    %cst_53 = arith.constant dense<0.000000e+00> : vector<2x128xf32>
    %221 = tpu.matmul %218, %1, %cst_53 {dimension_numbers = #tpu.dot_dimension_numbers<[1], [0], [0], [1], [0, 0, 1, 1], [], []>} : vector<2x32xf32>, vector<32x128xf32>, vector<2x128xf32> -> vector<2x128xf32>
    %222 = arith.addf %220, %221 : vector<2x128xf32>
    %223 = vector.extract_strided_slice %222 {offsets = [0, 0], sizes = [2, 32], strides = [1, 1]} : vector<2x128xf32> to vector<2x32xf32>
    %224 = arith.negf %223 : vector<2x32xf32>
    %225 = math.exp %224 : vector<2x32xf32>
    %cst_54 = arith.constant 1.000000e+00 : f32
    %226 = vector.broadcast %cst_54 : f32 to vector<2x32xf32>
    %227 = arith.addf %226, %225 : vector<2x32xf32>
    %228 = arith.divf %226, %227 : vector<2x32xf32>
    %229 = vector.extract_strided_slice %222 {offsets = [0, 32], sizes = [2, 32], strides = [1, 1]} : vector<2x128xf32> to vector<2x32xf32>
    %230 = arith.negf %229 : vector<2x32xf32>
    %231 = math.exp %230 : vector<2x32xf32>
    %cst_55 = arith.constant 1.000000e+00 : f32
    %232 = vector.broadcast %cst_55 : f32 to vector<2x32xf32>
    %233 = arith.addf %232, %231 : vector<2x32xf32>
    %234 = arith.divf %232, %233 : vector<2x32xf32>
    %235 = vector.extract_strided_slice %222 {offsets = [0, 64], sizes = [2, 32], strides = [1, 1]} : vector<2x128xf32> to vector<2x32xf32>
    %236 = math.tanh %235 : vector<2x32xf32>
    %237 = vector.extract_strided_slice %222 {offsets = [0, 96], sizes = [2, 32], strides = [1, 1]} : vector<2x128xf32> to vector<2x32xf32>
    %238 = arith.negf %237 : vector<2x32xf32>
    %239 = math.exp %238 : vector<2x32xf32>
    %cst_56 = arith.constant 1.000000e+00 : f32
    %240 = vector.broadcast %cst_56 : f32 to vector<2x32xf32>
    %241 = arith.addf %240, %239 : vector<2x32xf32>
    %242 = arith.divf %240, %241 : vector<2x32xf32>
    %243 = arith.mulf %234, %216 : vector<2x32xf32>
    %244 = arith.mulf %228, %236 : vector<2x32xf32>
    %245 = arith.addf %243, %244 : vector<2x32xf32>
    %246 = math.tanh %245 : vector<2x32xf32>
    %247 = arith.mulf %242, %246 : vector<2x32xf32>
    %c14 = arith.constant 14 : index
    %c0_57 = arith.constant 0 : index
    %248 = vector.load %arg10[%c14, %c0_57] : memref<18x32xf32, #tpu.memory_space<vmem>>, vector<2x32xf32>
    tpu.vector_store %arg10[%c14, %c0_57], %247 {strides = array<i32>} : memref<18x32xf32, #tpu.memory_space<vmem>>, vector<2x32xf32>,
    %249 = vector.extract_strided_slice %15 {offsets = [14, 0], sizes = [2, 128], strides = [1, 1]} : vector<16x128xf32> to vector<2x128xf32>
    %cst_58 = arith.constant dense<0.000000e+00> : vector<2x128xf32>
    %250 = tpu.matmul %247, %1, %cst_58 {dimension_numbers = #tpu.dot_dimension_numbers<[1], [0], [0], [1], [0, 0, 1, 1], [], []>} : vector<2x32xf32>, vector<32x128xf32>, vector<2x128xf32> -> vector<2x128xf32>
    %251 = arith.addf %249, %250 : vector<2x128xf32>
    %252 = vector.extract_strided_slice %251 {offsets = [0, 0], sizes = [2, 32], strides = [1, 1]} : vector<2x128xf32> to vector<2x32xf32>
    %253 = arith.negf %252 : vector<2x32xf32>
    %254 = math.exp %253 : vector<2x32xf32>
    %cst_59 = arith.constant 1.000000e+00 : f32
    %255 = vector.broadcast %cst_59 : f32 to vector<2x32xf32>
    %256 = arith.addf %255, %254 : vector<2x32xf32>
    %257 = arith.divf %255, %256 : vector<2x32xf32>
    %258 = vector.extract_strided_slice %251 {offsets = [0, 32], sizes = [2, 32], strides = [1, 1]} : vector<2x128xf32> to vector<2x32xf32>
    %259 = arith.negf %258 : vector<2x32xf32>
    %260 = math.exp %259 : vector<2x32xf32>
    %cst_60 = arith.constant 1.000000e+00 : f32
    %261 = vector.broadcast %cst_60 : f32 to vector<2x32xf32>
    %262 = arith.addf %261, %260 : vector<2x32xf32>
    %263 = arith.divf %261, %262 : vector<2x32xf32>
    %264 = vector.extract_strided_slice %251 {offsets = [0, 64], sizes = [2, 32], strides = [1, 1]} : vector<2x128xf32> to vector<2x32xf32>
    %265 = math.tanh %264 : vector<2x32xf32>
    %266 = vector.extract_strided_slice %251 {offsets = [0, 96], sizes = [2, 32], strides = [1, 1]} : vector<2x128xf32> to vector<2x32xf32>
    %267 = arith.negf %266 : vector<2x32xf32>
    %268 = math.exp %267 : vector<2x32xf32>
    %cst_61 = arith.constant 1.000000e+00 : f32
    %269 = vector.broadcast %cst_61 : f32 to vector<2x32xf32>
    %270 = arith.addf %269, %268 : vector<2x32xf32>
    %271 = arith.divf %269, %270 : vector<2x32xf32>
    %272 = arith.mulf %263, %245 : vector<2x32xf32>
    %273 = arith.mulf %257, %265 : vector<2x32xf32>
    %274 = arith.addf %272, %273 : vector<2x32xf32>
    %275 = math.tanh %274 : vector<2x32xf32>
    %276 = arith.mulf %271, %275 : vector<2x32xf32>
    %c16 = arith.constant 16 : index
    %c0_62 = arith.constant 0 : index
    %277 = vector.load %arg10[%c16, %c0_62] : memref<18x32xf32, #tpu.memory_space<vmem>>, vector<2x32xf32>
    tpu.vector_store %arg10[%c16, %c0_62], %276 {strides = array<i32>} : memref<18x32xf32, #tpu.memory_space<vmem>>, vector<2x32xf32>,
    %c0_63 = arith.constant 0 : index
    %c0_64 = arith.constant 0 : index
    %278 = vector.load %arg10[%c0_63, %c0_64] : memref<18x32xf32, #tpu.memory_space<vmem>>, vector<18x32xf32>
    %c0_65 = arith.constant 0 : index
    %c0_66 = arith.constant 0 : index
    %279 = vector.load %arg7[%c0_65, %c0_66] : memref<32x64xf32, #tpu.memory_space<vmem>>, vector<32x64xf32>
    %cst_67 = arith.constant dense<0.000000e+00> : vector<18x64xf32>
    %280 = tpu.matmul %278, %279, %cst_67 {dimension_numbers = #tpu.dot_dimension_numbers<[1], [0], [0], [1], [0, 0, 1, 1], [], []>} : vector<18x32xf32>, vector<32x64xf32>, vector<18x64xf32> -> vector<18x64xf32>
    %c0_68 = arith.constant 0 : index
    %c0_69 = arith.constant 0 : index
    %281 = vector.load %arg8[%c0_68, %c0_69] : memref<1x64xf32, #tpu.memory_space<vmem>>, vector<1x64xf32>
    %282 = vector.broadcast %281 : vector<1x64xf32> to vector<18x64xf32>
    %283 = arith.addf %280, %282 : vector<18x64xf32>
    %c0_70 = arith.constant 0 : index
    %c0_71 = arith.constant 0 : index
    %284 = vector.load %arg9[%c0_70, %c0_71] : memref<18x64xf32, #tpu.memory_space<vmem>>, vector<18x64xf32>
    tpu.vector_store %arg9[%c0_70, %c0_71], %283 {strides = array<i32>} : memref<18x64xf32, #tpu.memory_space<vmem>>, vector<18x64xf32>,
    return
  }
}

</mosaic_0001>

<llo_original>
// kernel: captioner_forward.1
$region0: #{captioner_forward.1}
  #allocation0 [shape = 'u32[]', space=smem, size = 0x4, offset = 0x4, fixed_abs, tag = 'smem constant byte address 0x4 - core index']
  #allocation1 [shape = 'u32[72,128]{1,0:T(1,128)}', space=vmem, size = 0x9000, scoped, tag = 'internal scratch']
  #allocation2 [shape = 'f32[18,32]{1,0:T(8,128)}', space=vmem, size = 0x3000, scoped, tag = 'scratch operand']
  %s0 = inlined_call_operand.vmem [shape: f32[2,768], index: 0, kind: input, shape index: {}]
  %s1 = inlined_call_operand.vmem [shape: f32[16,32], index: 1, kind: input, shape index: {}]
  %s2 = inlined_call_operand.vmem [shape: f32[768,32], index: 2, kind: input, shape index: {}]
  %s3 = inlined_call_operand.vmem [shape: f32[1,32], index: 3, kind: input, shape index: {}]
  %s4 = inlined_call_operand.vmem [shape: f32[32,128], index: 4, kind: input, shape index: {}]
  %s5 = inlined_call_operand.vmem [shape: f32[32,128], index: 5, kind: input, shape index: {}]
  %s6 = inlined_call_operand.vmem [shape: f32[1,128], index: 6, kind: input, shape index: {}]
  %s7 = inlined_call_operand.vmem [shape: f32[32,64], index: 7, kind: input, shape index: {}]
  %s8 = inlined_call_operand.vmem [shape: f32[1,64], index: 8, kind: input, shape index: {}]
  %s9 = inlined_call_operand.vmem [shape: f32[18,64], index: 9, kind: output, shape index: {}]
  %s10 = sld [smem:[#allocation0]]
  $region46: #{captioner_forward.1} parent=0
    _
  %s12 = ssub.s32 1, %s10
  %s13 = scalar_select 0, %s12, %s10
  // Predicated region
  $region2: #{captioner_forward.1} parent=0 // pred_check
    _
  $region3: #{captioner_forward.1} parent=0 // pred_check_branch
    %15 = sbr.rel (0) target = $region5
  $region4: #{captioner_forward.1} parent=0 // pred_region
    _
  $region5: #{captioner_forward.1} parent=0 // pred_fallthru
    _
  // Predicated region
  $region6: #{captioner_forward.1} parent=0 // pred_check
    _
  $region7: #{captioner_forward.1} parent=0 // pred_check_branch
    %17 = sbr.rel (0) target = $region9
  $region8: #{captioner_forward.1} parent=0 // pred_region
    _
  $region9: #{captioner_forward.1} parent=0 // pred_fallthru
    _
  // Predicated region
  $region10: #{captioner_forward.1} parent=0 // pred_check
    _
  $region11: #{captioner_forward.1} parent=0 // pred_check_branch
    %19 = sbr.rel (0) target = $region13
  $region12: #{captioner_forward.1} parent=0 // pred_region
    _
  $region13: #{captioner_forward.1} parent=0 // pred_fallthru
    _
  // Predicated region
  $region14: #{captioner_forward.1} parent=0 // pred_check
    _
  $region15: #{captioner_forward.1} parent=0 // pred_check_branch
    %21 = sbr.rel (0) target = $region17
  $region16: #{captioner_forward.1} parent=0 // pred_region
    _
  $region17: #{captioner_forward.1} parent=0 // pred_fallthru
    _
  // Predicated region
  $region18: #{captioner_forward.1} parent=0 // pred_check
    _
  $region19: #{captioner_forward.1} parent=0 // pred_check_branch
    %23 = sbr.rel (0) target = $region21
  $region20: #{captioner_forward.1} parent=0 // pred_region
    _
  $region21: #{captioner_forward.1} parent=0 // pred_fallthru
    _
  // Predicated region
  $region22: #{captioner_forward.1} parent=0 // pred_check
    _
  $region23: #{captioner_forward.1} parent=0 // pred_check_branch
    %25 = sbr.rel (0) target = $region25
  $region24: #{captioner_forward.1} parent=0 // pred_region
    _
  $region25: #{captioner_forward.1} parent=0 // pred_fallthru
    _
  // Predicated region
  $region26: #{captioner_forward.1} parent=0 // pred_check
    _
  $region27: #{captioner_forward.1} parent=0 // pred_check_branch
    %27 = sbr.rel (0) target = $region29
  $region28: #{captioner_forward.1} parent=0 // pred_region
    _
  $region29: #{captioner_forward.1} parent=0 // pred_fallthru
    _
  // Predicated region
  $region30: #{captioner_forward.1} parent=0 // pred_check
    _
  $region31: #{captioner_forward.1} parent=0 // pred_check_branch
    %29 = sbr.rel (0) target = $region33
  $region32: #{captioner_forward.1} parent=0 // pred_region
    _
  $region33: #{captioner_forward.1} parent=0 // pred_fallthru
    _
  // Predicated region
  $region34: #{captioner_forward.1} parent=0 // pred_check
    _
  $region35: #{captioner_forward.1} parent=0 // pred_check_branch
    %31 = sbr.rel (0) target = $region37
  $region36: #{captioner_forward.1} parent=0 // pred_region
    _
  $region37: #{captioner_forward.1} parent=0 // pred_fallthru
    _
  %v32 = vld [vmem:[%s4] sm:$0xff]
  %v33 = vld [vmem:[%s4 + $0x8] sm:$0xff]
  %v34 = vld [vmem:[%s4 + $0x10] sm:$0xff]
  %v35 = vld [vmem:[%s4 + $0x18] sm:$0xff]
  %v36 = vld [vmem:[%s5] sm:$0xff]
  %v37 = vld [vmem:[%s5 + $0x8] sm:$0xff]
  %v38 = vld [vmem:[%s5 + $0x10] sm:$0xff]
  %v39 = vld [vmem:[%s5 + $0x18] sm:$0xff]
  %v40 = vld [vmem:[%s6] sm:$0x1]
  %v41 = vld [vmem:[%s0] sm:$0xff]
  %v42 = vld [vmem:[%s0 + $0x8] sm:$0xf]
  %v43 = vld [vmem:[%s2] sm:$0xff]
  %v44 = vld [vmem:[%s2 + $0x8] sm:$0xff]
  %v45 = vld [vmem:[%s2 + $0x10] sm:$0xff]
  %v46 = vld [vmem:[%s2 + $0x18] sm:$0xff]
  %v47 = vld [vmem:[%s2 + $0x20] sm:$0xff]
  %v48 = vld [vmem:[%s2 + $0x28] sm:$0xff]
  %v49 = vld [vmem:[%s2 + $0x30] sm:$0xff]
  %v50 = vld [vmem:[%s2 + $0x38] sm:$0xff]
  %v51 = vld [vmem:[%s2 + $0x40] sm:$0xff]
  %v52 = vld [vmem:[%s2 + $0x48] sm:$0xff]
  %v53 = vld [vmem:[%s2 + $0x50] sm:$0xff]
  %v54 = vld [vmem:[%s2 + $0x58] sm:$0xff]
  %v55 = vld [vmem:[%s2 + $0x60] sm:$0xff]
  %v56 = vld [vmem:[%s2 + $0x68] sm:$0xff]
  %v57 = vld [vmem:[%s2 + $0x70] sm:$0xff]
  %v58 = vld [vmem:[%s2 + $0x78] sm:$0xff]
  %v59 = vld [vmem:[%s2 + $0x80] sm:$0xff]
  %v60 = vld [vmem:[%s2 + $0x88] sm:$0xff]
  %v61 = vld [vmem:[%s2 + $0x90] sm:$0xff]
  %v62 = vld [vmem:[%s2 + $0x98] sm:$0xff]
  %v63 = vld [vmem:[%s2 + $0xa0] sm:$0xff]
  %v64 = vld [vmem:[%s2 + $0xa8] sm:$0xff]
  %v65 = vld [vmem:[%s2 + $0xb0] sm:$0xff]
  %v66 = vld [vmem:[%s2 + $0xb8] sm:$0xff]
  %v67 = vld [vmem:[%s2 + $0xc0] sm:$0xff]
  %v68 = vld [vmem:[%s2 + $0xc8] sm:$0xff]
  %v69 = vld [vmem:[%s2 + $0xd0] sm:$0xff]
  %v70 = vld [vmem:[%s2 + $0xd8] sm:$0xff]
  %v71 = vld [vmem:[%s2 + $0xe0] sm:$0xff]
  %v72 = vld [vmem:[%s2 + $0xe8] sm:$0xff]
  %v73 = vld [vmem:[%s2 + $0xf0] sm:$0xff]
  %v74 = vld [vmem:[%s2 + $0xf8] sm:$0xff]
  %v75 = vld [vmem:[%s2 + $0x100] sm:$0xff]
  %v76 = vld [vmem:[%s2 + $0x108] sm:$0xff]
  %v77 = vld [vmem:[%s2 + $0x110] sm:$0xff]
  %v78 = vld [vmem:[%s2 + $0x118] sm:$0xff]
  %v79 = vld [vmem:[%s2 + $0x120] sm:$0xff]
  %v80 = vld [vmem:[%s2 + $0x128] sm:$0xff]
  %v81 = vld [vmem:[%s2 + $0x130] sm:$0xff]
  %v82 = vld [vmem:[%s2 + $0x138] sm:$0xff]
  %v83 = vld [vmem:[%s2 + $0x140] sm:$0xff]
  %v84 = vld [vmem:[%s2 + $0x148] sm:$0xff]
  %v85 = vld [vmem:[%s2 + $0x150] sm:$0xff]
  %v86 = vld [vmem:[%s2 + $0x158] sm:$0xff]
  %v87 = vld [vmem:[%s2 + $0x160] sm:$0xff]
  %v88 = vld [vmem:[%s2 + $0x168] sm:$0xff]
  %v89 = vld [vmem:[%s2 + $0x170] sm:$0xff]
  %v90 = vld [vmem:[%s2 + $0x178] sm:$0xff]
  %v91 = vld [vmem:[%s2 + $0x180] sm:$0xff]
  %v92 = vld [vmem:[%s2 + $0x188] sm:$0xff]
  %v93 = vld [vmem:[%s2 + $0x190] sm:$0xff]
  %v94 = vld [vmem:[%s2 + $0x198] sm:$0xff]
  %v95 = vld [vmem:[%s2 + $0x1a0] sm:$0xff]
  %v96 = vld [vmem:[%s2 + $0x1a8] sm:$0xff]
  %v97 = vld [vmem:[%s2 + $0x1b0] sm:$0xff]
  %v98 = vld [vmem:[%s2 + $0x1b8] sm:$0xff]
  %v99 = vld [vmem:[%s2 + $0x1c0] sm:$0xff]
  %v100 = vld [vmem:[%s2 + $0x1c8] sm:$0xff]
  %v101 = vld [vmem:[%s2 + $0x1d0] sm:$0xff]
  %v102 = vld [vmem:[%s2 + $0x1d8] sm:$0xff]
  %v103 = vld [vmem:[%s2 + $0x1e0] sm:$0xff]
  %v104 = vld [vmem:[%s2 + $0x1e8] sm:$0xff]
  %v105 = vld [vmem:[%s2 + $0x1f0] sm:$0xff]
  %v106 = vld [vmem:[%s2 + $0x1f8] sm:$0xff]
  %v107 = vld [vmem:[%s2 + $0x200] sm:$0xff]
  %v108 = vld [vmem:[%s2 + $0x208] sm:$0xff]
  %v109 = vld [vmem:[%s2 + $0x210] sm:$0xff]
  %v110 = vld [vmem:[%s2 + $0x218] sm:$0xff]
  %v111 = vld [vmem:[%s2 + $0x220] sm:$0xff]
  %v112 = vld [vmem:[%s2 + $0x228] sm:$0xff]
  %v113 = vld [vmem:[%s2 + $0x230] sm:$0xff]
  %v114 = vld [vmem:[%s2 + $0x238] sm:$0xff]
  %v115 = vld [vmem:[%s2 + $0x240] sm:$0xff]
  %v116 = vld [vmem:[%s2 + $0x248] sm:$0xff]
  %v117 = vld [vmem:[%s2 + $0x250] sm:$0xff]
  %v118 = vld [vmem:[%s2 + $0x258] sm:$0xff]
  %v119 = vld [vmem:[%s2 + $0x260] sm:$0xff]
  %v120 = vld [vmem:[%s2 + $0x268] sm:$0xff]
  %v121 = vld [vmem:[%s2 + $0x270] sm:$0xff]
  %v122 = vld [vmem:[%s2 + $0x278] sm:$0xff]
  %v123 = vld [vmem:[%s2 + $0x280] sm:$0xff]
  %v124 = vld [vmem:[%s2 + $0x288] sm:$0xff]
  %v125 = vld [vmem:[%s2 + $0x290] sm:$0xff]
  %v126 = vld [vmem:[%s2 + $0x298] sm:$0xff]
  %v127 = vld [vmem:[%s2 + $0x2a0] sm:$0xff]
  %v128 = vld [vmem:[%s2 + $0x2a8] sm:$0xff]
  %v129 = vld [vmem:[%s2 + $0x2b0] sm:$0xff]
  %v130 = vld [vmem:[%s2 + $0x2b8] sm:$0xff]
  %v131 = vld [vmem:[%s2 + $0x2c0] sm:$0xff]
  %v132 = vld [vmem:[%s2 + $0x2c8] sm:$0xff]
  %v133 = vld [vmem:[%s2 + $0x2d0] sm:$0xff]
  %v134 = vld [vmem:[%s2 + $0x2d8] sm:$0xff]
  %v135 = vld [vmem:[%s2 + $0x2e0] sm:$0xff]
  %v136 = vld [vmem:[%s2 + $0x2e8] sm:$0xff]
  %v137 = vld [vmem:[%s2 + $0x2f0] sm:$0xff]
  %v138 = vld [vmem:[%s2 + $0x2f8] sm:$0xff]
  %v139 = vld [vmem:[%s3] sm:$0x1]
  %v141 = vperm.slane %v139, 0
  %145 = vst [vmem:[#allocation1] ss:$4 sm:$0xff] %v41
  %s146 = scalar_lea.vmem [#allocation1], 32
  %147 = vst [vmem:[%s146] ss:$4 sm:$0xff] %v42
  %v148 = vld.sshfl [vmem:[#allocation1] sm:$0xff pattern:$0x73625140]
  %v149 = vld.sshfl [vmem:[#allocation1 + $0x8] sm:$0xff pattern:$0x73625140]
  %v150 = vld.sshfl [vmem:[#allocation1 + $0x10] sm:$0xff pattern:$0x73625140]
  %v151 = vld.sshfl [vmem:[#allocation1 + $0x18] sm:$0xff pattern:$0x73625140]
  %v152 = vld.sshfl [vmem:[#allocation1 + $0x20] sm:$0xff pattern:$0x73625140]
  %v153 = vld.sshfl [vmem:[#allocation1 + $0x28] sm:$0xff pattern:$0x73625140]
  %160 = vmatpush.msra.mxu0 %v58
  %161 = vmatpush.msra.mxu0 %v57
  %162 = vmatpush.msra.mxu0 %v56
  %163 = vmatpush.msra.mxu0 %v55
  %164 = vmatpush.msra.mxu0 %v54
  %165 = vmatpush.msra.mxu0 %v53
  %166 = vmatpush.msra.mxu0 %v52
  %167 = vmatpush.msra.mxu0 %v51
  %168 = vmatpush.msra.mxu0 %v50
  %169 = vmatpush.msra.mxu0 %v49
  %170 = vmatpush.msra.mxu0 %v48
  %171 = vmatpush.msra.mxu0 %v47
  %172 = vmatpush.msra.mxu0 %v46
  %173 = vmatpush.msra.mxu0 %v45
  %174 = vmatpush.msra.mxu0 %v44
  %175 = vmatpush.msra.mxu0 %v43
  %176 = vmatmul.f32.gmra.mxu0 %v148
  %v177 = vpop.f32.mrf.mxu0
  %v178 = vadd.f32 %v141, %v177
  %179 = vdwg.mxu0
  %180 = vmatpush.msra.mxu0 %v74
  %181 = vmatpush.msra.mxu0 %v73
  %182 = vmatpush.msra.mxu0 %v72
  %183 = vmatpush.msra.mxu0 %v71
  %184 = vmatpush.msra.mxu0 %v70
  %185 = vmatpush.msra.mxu0 %v69
  %186 = vmatpush.msra.mxu0 %v68
  %187 = vmatpush.msra.mxu0 %v67
  %188 = vmatpush.msra.mxu0 %v66
  %189 = vmatpush.msra.mxu0 %v65
  %190 = vmatpush.msra.mxu0 %v64
  %191 = vmatpush.msra.mxu0 %v63
  %192 = vmatpush.msra.mxu0 %v62
  %193 = vmatpush.msra.mxu0 %v61
  %194 = vmatpush.msra.mxu0 %v60
  %195 = vmatpush.msra.mxu0 %v59
  %196 = vmatmul.f32.gmra.mxu0 %v149
  %v197 = vpop.f32.mrf.mxu0
  %v198 = vadd.f32 %v178, %v197
  %199 = vdwg.mxu0
  %200 = vmatpush.msra.mxu0 %v90
  %201 = vmatpush.msra.mxu0 %v89
  %202 = vmatpush.msra.mxu0 %v88
  %203 = vmatpush.msra.mxu0 %v87
  %204 = vmatpush.msra.mxu0 %v86
  %205 = vmatpush.msra.mxu0 %v85
  %206 = vmatpush.msra.mxu0 %v84
  %207 = vmatpush.msra.mxu0 %v83
  %208 = vmatpush.msra.mxu0 %v82
  %209 = vmatpush.msra.mxu0 %v81
  %210 = vmatpush.msra.mxu0 %v80
  %211 = vmatpush.msra.mxu0 %v79
  %212 = vmatpush.msra.mxu0 %v78
  %213 = vmatpush.msra.mxu0 %v77
  %214 = vmatpush.msra.mxu0 %v76
  %215 = vmatpush.msra.mxu0 %v75
  %216 = vmatmul.f32.gmra.mxu0 %v150
  %v217 = vpop.f32.mrf.mxu0
  %v218 = vadd.f32 %v198, %v217
  %219 = vdwg.mxu0
  %220 = vmatpush.msra.mxu0 %v106
  %221 = vmatpush.msra.mxu0 %v105
  %222 = vmatpush.msra.mxu0 %v104
  %223 = vmatpush.msra.mxu0 %v103
  %224 = vmatpush.msra.mxu0 %v102
  %225 = vmatpush.msra.mxu0 %v101
  %226 = vmatpush.msra.mxu0 %v100
  %227 = vmatpush.msra.mxu0 %v99
  %228 = vmatpush.msra.mxu0 %v98
  %229 = vmatpush.msra.mxu0 %v97
  %230 = vmatpush.msra.mxu0 %v96
  %231 = vmatpush.msra.mxu0 %v95
  %232 = vmatpush.msra.mxu0 %v94
  %233 = vmatpush.msra.mxu0 %v93
  %234 = vmatpush.msra.mxu0 %v92
  %235 = vmatpush.msra.mxu0 %v91
  %236 = vmatmul.f32.gmra.mxu0 %v151
  %v237 = vpop.f32.mrf.mxu0
  %v238 = vadd.f32 %v218, %v237
  %239 = vdwg.mxu0
  %240 = vmatpush.msra.mxu0 %v122
  %241 = vmatpush.msra.mxu0 %v121
  %242 = vmatpush.msra.mxu0 %v120
  %243 = vmatpush.msra.mxu0 %v119
  %244 = vmatpush.msra.mxu0 %v118
  %245 = vmatpush.msra.mxu0 %v117
  %246 = vmatpush.msra.mxu0 %v116
  %247 = vmatpush.msra.mxu0 %v115
  %248 = vmatpush.msra.mxu0 %v114
  %249 = vmatpush.msra.mxu0 %v113
  %250 = vmatpush.msra.mxu0 %v112
  %251 = vmatpush.msra.mxu0 %v111
  %252 = vmatpush.msra.mxu0 %v110
  %253 = vmatpush.msra.mxu0 %v109
  %254 = vmatpush.msra.mxu0 %v108
  %255 = vmatpush.msra.mxu0 %v107
  %256 = vmatmul.f32.gmra.mxu0 %v152
  %v257 = vpop.f32.mrf.mxu0
  %v258 = vadd.f32 %v238, %v257
  %259 = vdwg.mxu0
  %260 = vmatpush.msra.mxu0 %v138
  %261 = vmatpush.msra.mxu0 %v137
  %262 = vmatpush.msra.mxu0 %v136
  %263 = vmatpush.msra.mxu0 %v135
  %264 = vmatpush.msra.mxu0 %v134
  %265 = vmatpush.msra.mxu0 %v133
  %266 = vmatpush.msra.mxu0 %v132
  %267 = vmatpush.msra.mxu0 %v131
  %268 = vmatpush.msra.mxu0 %v130
  %269 = vmatpush.msra.mxu0 %v129
  %270 = vmatpush.msra.mxu0 %v128
  %271 = vmatpush.msra.mxu0 %v127
  %272 = vmatpush.msra.mxu0 %v126
  %273 = vmatpush.msra.mxu0 %v125
  %274 = vmatpush.msra.mxu0 %v124
  %275 = vmatpush.msra.mxu0 %v123
  %276 = vmatmul.f32.gmra.mxu0 %v153
  %v277 = vpop.f32.mrf.mxu0
  %v278 = vadd.f32 %v258, %v277
  %279 = vdwg.mxu0
  %v281 = vperm.slane %v40, 0
  %vm283 = vcmask 261120
  %v285 = vsel %vm283, %v278, 0
  %287 = vmatpush.msra.mxu0 0.0
  %288 = vmatpush.msra.mxu0 0.0
  %289 = vmatpush.msra.mxu0 0.0
  %290 = vmatpush.msra.mxu0 0.0
  %291 = vmatpush.msra.mxu0 0.0
  %292 = vmatpush.msra.mxu0 0.0
  %293 = vmatpush.msra.mxu0 0.0
  %294 = vmatpush.msra.mxu0 0.0
  %295 = vmatpush.msra.mxu0 0.0
  %296 = vmatpush.msra.mxu0 0.0
  %297 = vmatpush.msra.mxu0 0.0
  %298 = vmatpush.msra.mxu0 0.0
  %299 = vmatpush.msra.mxu0 %v35
  %300 = vmatpush.msra.mxu0 %v34
  %301 = vmatpush.msra.mxu0 %v33
  %302 = vmatpush.msra.mxu0 %v32
  %303 = vmatmul.f32.gmra.mxu0 %v285
  %v304 = vpop.f32.mrf.mxu0
  %v305 = vadd.f32 %v281, %v304
  %306 = vdwg.mxu0
  %v307 = vld [vmem:[%s1] sm:$0xff]
  %v308 = vld [vmem:[%s1 + $0x8] sm:$0xff]
  %v310 = vsel %vm283, %v307, 0
  %v313 = vsel %vm283, %v308, 0
  %315 = vmatpush.msra.mxu0 0.0
  %316 = vmatpush.msra.mxu0 0.0
  %317 = vmatpush.msra.mxu0 0.0
  %318 = vmatpush.msra.mxu0 0.0
  %319 = vmatpush.msra.mxu0 0.0
  %320 = vmatpush.msra.mxu0 0.0
  %321 = vmatpush.msra.mxu0 0.0
  %322 = vmatpush.msra.mxu0 0.0
  %323 = vmatpush.msra.mxu0 0.0
  %324 = vmatpush.msra.mxu0 0.0
  %325 = vmatpush.msra.mxu0 0.0
  %326 = vmatpush.msra.mxu0 0.0
  %327 = vmatpush.msra.mxu0 %v35
  %328 = vmatpush.msra.mxu0 %v34
  %329 = vmatpush.msra.mxu0 %v33
  %330 = vmatpush.msra.mxu0 %v32
  %331 = vmatmul.f32.gmra.mxu0 %v310
  %v332 = vpop.f32.mrf.mxu0
  %v333 = vadd.f32 %v281, %v332
  %334 = vmatmul.f32.gmra.mxu0 %v313
  %v335 = vpop.f32.mrf.mxu0
  %v336 = vadd.f32 %v281, %v335
  %337 = vdwg.mxu0
  %v339 = vsel %vm283, 0.0, 0
  %341 = vmatpush.msra.mxu0 0.0
  %342 = vmatpush.msra.mxu0 0.0
  %343 = vmatpush.msra.mxu0 0.0
  %344 = vmatpush.msra.mxu0 0.0
  %345 = vmatpush.msra.mxu0 0.0
  %346 = vmatpush.msra.mxu0 0.0
  %347 = vmatpush.msra.mxu0 0.0
  %348 = vmatpush.msra.mxu0 0.0
  %349 = vmatpush.msra.mxu0 0.0
  %350 = vmatpush.msra.mxu0 0.0
  %351 = vmatpush.msra.mxu0 0.0
  %352 = vmatpush.msra.mxu0 0.0
  %353 = vmatpush.msra.mxu0 %v39
  %354 = vmatpush.msra.mxu0 %v38
  %355 = vmatpush.msra.mxu0 %v37
  %356 = vmatpush.msra.mxu0 %v36
  %357 = vmatmul.f32.gmra.mxu0 %v339
  %v358 = vpop.f32.mrf.mxu0
  %v359 = vadd.f32 0.0, %v358
  %360 = vdwg.mxu0
  %v361 = vadd.f32 %v305, %v359
  %v362 = vxor.u32 %v361, 2147483648
  %v363 = vmul.f32 %v362, 1.442695
  %v364 = vpow.pop %v363
  %v365 = vadd.f32 %v364, 1.0
  %v366 = vrcp.pop %v365
  %v367 = vmul.f32 %v365, %v366
  %v368 = vsub.f32 1.0, %v367
  %v369 = vmul.f32 %v366, %v368
  %v370 = vadd.f32 %v366, %v369
  %vm371 = vweird.f32 %v365
  %vm372 = vweird.f32 %v366
  %vm373 = vmor %vm371, %vm372
  %v374 = vsel %vm373, %v366, %v370
  %v375 = vand.u32 2147483647, %v365
  %vm376 = vcmp.eq.f32.partialorder %v375, 8.507059e+37
  %v377 = vand.u32 %v365, 2147483648
  %v378 = vor.u32 1.1754944e-38, %v377
  %v379 = vsel %vm376, %v378, %v374
  %v380 = vmul.f32 1.0, %v379
  %v381 = vtanh.pop %v361
  %v382 = vmul.f32 %v380, 0.0
  %384 = vrot.lane.b32.xlu0 %v381, 64
  %v385 = vpop.permute.xlu0 %384
  %v387 = vmul.f32 %v380, %v385
  %389 = vrot.lane.b32.xlu0 %v387, 32
  %v390 = vpop.permute.xlu0 %389
  %v392 = vadd.f32 %v382, %v390
  %v393 = vtanh.pop %v392
  %395 = vrot.lane.b32.xlu0 %v393, 64
  %v396 = vpop.permute.xlu0 %395
  %v398 = vmul.f32 %v380, %v396
  %400 = vrot.lane.b32.xlu0 %v398, 32
  %v401 = vpop.permute.xlu0 %400
  %vm403 = vcmask 254976
  %404 = vst.msk [vmem:[#allocation2] sm:$0x3] %vm403, %v401
  %v405 = vsel %vm283, %v401, 0
  %407 = vmatpush.msra.mxu0 0.0
  %408 = vmatpush.msra.mxu0 0.0
  %409 = vmatpush.msra.mxu0 0.0
  %410 = vmatpush.msra.mxu0 0.0
  %411 = vmatpush.msra.mxu0 0.0
  %412 = vmatpush.msra.mxu0 0.0
  %413 = vmatpush.msra.mxu0 0.0
  %414 = vmatpush.msra.mxu0 0.0
  %415 = vmatpush.msra.mxu0 0.0
  %416 = vmatpush.msra.mxu0 0.0
  %417 = vmatpush.msra.mxu0 0.0
  %418 = vmatpush.msra.mxu0 0.0
  %419 = vmatpush.msra.mxu0 %v39
  %420 = vmatpush.msra.mxu0 %v38
  %421 = vmatpush.msra.mxu0 %v37
  %422 = vmatpush.msra.mxu0 %v36
  %423 = vmatmul.f32.gmra.mxu0 %v405
  %v424 = vpop.f32.mrf.mxu0
  %v425 = vadd.f32 0.0, %v424
  %426 = vdwg.mxu0
  %v427 = vadd.f32 %v333, %v425
  %v428 = vxor.u32 %v427, 2147483648
  %v429 = vmul.f32 %v428, 1.442695
  %v430 = vpow.pop %v429
  %v431 = vadd.f32 %v430, 1.0
  %v432 = vrcp.pop %v431
  %v433 = vmul.f32 %v431, %v432
  %v434 = vsub.f32 1.0, %v433
  %v435 = vmul.f32 %v432, %v434
  %v436 = vadd.f32 %v432, %v435
  %vm437 = vweird.f32 %v431
  %vm438 = vweird.f32 %v432
  %vm439 = vmor %vm437, %vm438
  %v440 = vsel %vm439, %v432, %v436
  %v441 = vand.u32 2147483647, %v431
  %vm442 = vcmp.eq.f32.partialorder %v441, 8.507059e+37
  %v443 = vand.u32 %v431, 2147483648
  %v444 = vor.u32 1.1754944e-38, %v443
  %v445 = vsel %vm442, %v444, %v440
  %v446 = vmul.f32 1.0, %v445
  %v447 = vtanh.pop %v427
  %v448 = vmul.f32 %v446, %v392
  %450 = vrot.lane.b32.xlu0 %v447, 64
  %v451 = vpop.permute.xlu0 %450
  %v453 = vmul.f32 %v446, %v451
  %455 = vrot.lane.b32.xlu0 %v453, 32
  %v456 = vpop.permute.xlu0 %455
  %v458 = vadd.f32 %v448, %v456
  %v459 = vtanh.pop %v458
  %461 = vrot.lane.b32.xlu0 %v459, 64
  %v462 = vpop.permute.xlu0 %461
  %v464 = vmul.f32 %v446, %v462
  %466 = vrot.lane.b32.xlu0 %v464, 32
  %v467 = vpop.permute.xlu0 %466
  %469 = vst.msk [vmem:[#allocation2 + $0x2] sm:$0x3] %vm403, %v467
  %v470 = vsel %vm283, %v467, 0
  %472 = vmatpush.msra.mxu0 0.0
  %473 = vmatpush.msra.mxu0 0.0
  %474 = vmatpush.msra.mxu0 0.0
  %475 = vmatpush.msra.mxu0 0.0
  %476 = vmatpush.msra.mxu0 0.0
  %477 = vmatpush.msra.mxu0 0.0
  %478 = vmatpush.msra.mxu0 0.0
  %479 = vmatpush.msra.mxu0 0.0
  %480 = vmatpush.msra.mxu0 0.0
  %481 = vmatpush.msra.mxu0 0.0
  %482 = vmatpush.msra.mxu0 0.0
  %483 = vmatpush.msra.mxu0 0.0
  %484 = vmatpush.msra.mxu0 %v39
  %485 = vmatpush.msra.mxu0 %v38
  %486 = vmatpush.msra.mxu0 %v37
  %487 = vmatpush.msra.mxu0 %v36
  %488 = vmatmul.f32.gmra.mxu0 %v470
  %v489 = vpop.f32.mrf.mxu0
  %v490 = vadd.f32 0.0, %v489
  %491 = vdwg.mxu0
  %v493 = vrot.slane %v490, 6
  %v495 = vadd.f32 %v333, %v493
  %v496 = vxor.u32 %v495, 2147483648
  %v497 = vmul.f32 %v496, 1.442695
  %v498 = vpow.pop %v497
  %v499 = vadd.f32 %v498, 1.0
  %v500 = vrcp.pop %v499
  %v501 = vmul.f32 %v499, %v500
  %v502 = vsub.f32 1.0, %v501
  %v503 = vmul.f32 %v500, %v502
  %v504 = vadd.f32 %v500, %v503
  %vm505 = vweird.f32 %v499
  %vm506 = vweird.f32 %v500
  %vm507 = vmor %vm505, %vm506
  %v508 = vsel %vm507, %v500, %v504
  %v509 = vand.u32 2147483647, %v499
  %vm510 = vcmp.eq.f32.partialorder %v509, 8.507059e+37
  %v511 = vand.u32 %v499, 2147483648
  %v512 = vor.u32 1.1754944e-38, %v511
  %v513 = vsel %vm510, %v512, %v508
  %v514 = vmul.f32 1.0, %v513
  %v515 = vtanh.pop %v495
  %v517 = vrot.slane %v458, 6
  %v519 = vmul.f32 %v514, %v517
  %521 = vrot.lane.b32.xlu0 %v515, 64
  %v522 = vpop.permute.xlu0 %521
  %v524 = vmul.f32 %v514, %v522
  %526 = vrot.lane.b32.xlu0 %v524, 32
  %v527 = vpop.permute.xlu0 %526
  %v529 = vadd.f32 %v519, %v527
  %v530 = vtanh.pop %v529
  %532 = vrot.lane.b32.xlu0 %v530, 64
  %v533 = vpop.permute.xlu0 %532
  %v535 = vmul.f32 %v514, %v533
  %537 = vrot.lane.b32.xlu0 %v535, 32
  %v538 = vpop.permute.xlu0 %537
  %vm540 = vcmask 257026
  %541 = vst.msk [vmem:[#allocation2 + $0x2] sm:$0xc] %vm540, %v538
  %v542 = vrot.slane %v535, 2
  %543 = vrot.lane.b32.xlu0 %v542, 32
  %v544 = vpop.permute.xlu0 %543
  %v545 = vsel %vm283, %v544, 0
  %547 = vmatpush.msra.mxu0 0.0
  %548 = vmatpush.msra.mxu0 0.0
  %549 = vmatpush.msra.mxu0 0.0
  %550 = vmatpush.msra.mxu0 0.0
  %551 = vmatpush.msra.mxu0 0.0
  %552 = vmatpush.msra.mxu0 0.0
  %553 = vmatpush.msra.mxu0 0.0
  %554 = vmatpush.msra.mxu0 0.0
  %555 = vmatpush.msra.mxu0 0.0
  %556 = vmatpush.msra.mxu0 0.0
  %557 = vmatpush.msra.mxu0 0.0
  %558 = vmatpush.msra.mxu0 0.0
  %559 = vmatpush.msra.mxu0 %v39
  %560 = vmatpush.msra.mxu0 %v38
  %561 = vmatpush.msra.mxu0 %v37
  %562 = vmatpush.msra.mxu0 %v36
  %563 = vmatmul.f32.gmra.mxu0 %v545
  %v564 = vpop.f32.mrf.mxu0
  %v565 = vadd.f32 0.0, %v564
  %566 = vdwg.mxu0
  %v568 = vrot.slane %v565, 4
  %v570 = vadd.f32 %v333, %v568
  %v571 = vxor.u32 %v570, 2147483648
  %v572 = vmul.f32 %v571, 1.442695
  %v573 = vpow.pop %v572
  %v574 = vadd.f32 %v573, 1.0
  %v575 = vrcp.pop %v574
  %v576 = vmul.f32 %v574, %v575
  %v577 = vsub.f32 1.0, %v576
  %v578 = vmul.f32 %v575, %v577
  %v579 = vadd.f32 %v575, %v578
  %vm580 = vweird.f32 %v574
  %vm581 = vweird.f32 %v575
  %vm582 = vmor %vm580, %vm581
  %v583 = vsel %vm582, %v575, %v579
  %v584 = vand.u32 2147483647, %v574
  %vm585 = vcmp.eq.f32.partialorder %v584, 8.507059e+37
  %v586 = vand.u32 %v574, 2147483648
  %v587 = vor.u32 1.1754944e-38, %v586
  %v588 = vsel %vm585, %v587, %v583
  %v589 = vmul.f32 1.0, %v588
  %v590 = vtanh.pop %v570
  %v592 = vrot.slane %v529, 6
  %v594 = vmul.f32 %v589, %v592
  %596 = vrot.lane.b32.xlu0 %v590, 64
  %v597 = vpop.permute.xlu0 %596
  %v599 = vmul.f32 %v589, %v597
  %601 = vrot.lane.b32.xlu0 %v599, 32
  %v602 = vpop.permute.xlu0 %601
  %v604 = vadd.f32 %v594, %v602
  %v605 = vtanh.pop %v604
  %607 = vrot.lane.b32.xlu0 %v605, 64
  %v608 = vpop.permute.xlu0 %607
  %v610 = vmul.f32 %v589, %v608
  %612 = vrot.lane.b32.xlu0 %v610, 32
  %v613 = vpop.permute.xlu0 %612
  %vm615 = vcmask 259076
  %616 = vst.msk [vmem:[#allocation2 + $0x2] sm:$0x30] %vm615, %v613
  %v617 = vrot.slane %v610, 4
  %618 = vrot.lane.b32.xlu0 %v617, 32
  %v619 = vpop.permute.xlu0 %618
  %v620 = vsel %vm283, %v619, 0
  %622 = vmatpush.msra.mxu0 0.0
  %623 = vmatpush.msra.mxu0 0.0
  %624 = vmatpush.msra.mxu0 0.0
  %625 = vmatpush.msra.mxu0 0.0
  %626 = vmatpush.msra.mxu0 0.0
  %627 = vmatpush.msra.mxu0 0.0
  %628 = vmatpush.msra.mxu0 0.0
  %629 = vmatpush.msra.mxu0 0.0
  %630 = vmatpush.msra.mxu0 0.0
  %631 = vmatpush.msra.mxu0 0.0
  %632 = vmatpush.msra.mxu0 0.0
  %633 = vmatpush.msra.mxu0 0.0
  %634 = vmatpush.msra.mxu0 %v39
  %635 = vmatpush.msra.mxu0 %v38
  %636 = vmatpush.msra.mxu0 %v37
  %637 = vmatpush.msra.mxu0 %v36
  %638 = vmatmul.f32.gmra.mxu0 %v620
  %v639 = vpop.f32.mrf.mxu0
  %v640 = vadd.f32 0.0, %v639
  %641 = vdwg.mxu0
  %v643 = vrot.slane %v640, 2
  %v645 = vadd.f32 %v333, %v643
  %v646 = vxor.u32 %v645, 2147483648
  %v647 = vmul.f32 %v646, 1.442695
  %v648 = vpow.pop %v647
  %v649 = vadd.f32 %v648, 1.0
  %v650 = vrcp.pop %v649
  %v651 = vmul.f32 %v649, %v650
  %v652 = vsub.f32 1.0, %v651
  %v653 = vmul.f32 %v650, %v652
  %v654 = vadd.f32 %v650, %v653
  %vm655 = vweird.f32 %v649
  %vm656 = vweird.f32 %v650
  %vm657 = vmor %vm655, %vm656
  %v658 = vsel %vm657, %v650, %v654
  %v659 = vand.u32 2147483647, %v649
  %vm660 = vcmp.eq.f32.partialorder %v659, 8.507059e+37
  %v661 = vand.u32 %v649, 2147483648
  %v662 = vor.u32 1.1754944e-38, %v661
  %v663 = vsel %vm660, %v662, %v658
  %v664 = vmul.f32 1.0, %v663
  %v665 = vtanh.pop %v645
  %v667 = vrot.slane %v604, 6
  %v669 = vmul.f32 %v664, %v667
  %671 = vrot.lane.b32.xlu0 %v665, 64
  %v672 = vpop.permute.xlu0 %671
  %v674 = vmul.f32 %v664, %v672
  %676 = vrot.lane.b32.xlu0 %v674, 32
  %v677 = vpop.permute.xlu0 %676
  %v679 = vadd.f32 %v669, %v677
  %v680 = vtanh.pop %v679
  %682 = vrot.lane.b32.xlu0 %v680, 64
  %v683 = vpop.permute.xlu0 %682
  %v685 = vmul.f32 %v664, %v683
  %687 = vrot.lane.b32.xlu0 %v685, 32
  %v688 = vpop.permute.xlu0 %687
  %vm690 = vcmask 261126
  %691 = vst.msk [vmem:[#allocation2 + $0x2] sm:$0xc0] %vm690, %v688
  %v692 = vrot.slane %v685, 6
  %693 = vrot.lane.b32.xlu0 %v692, 32
  %v694 = vpop.permute.xlu0 %693
  %v695 = vsel %vm283, %v694, 0
  %697 = vmatpush.msra.mxu0 0.0
  %698 = vmatpush.msra.mxu0 0.0
  %699 = vmatpush.msra.mxu0 0.0
  %700 = vmatpush.msra.mxu0 0.0
  %701 = vmatpush.msra.mxu0 0.0
  %702 = vmatpush.msra.mxu0 0.0
  %703 = vmatpush.msra.mxu0 0.0
  %704 = vmatpush.msra.mxu0 0.0
  %705 = vmatpush.msra.mxu0 0.0
  %706 = vmatpush.msra.mxu0 0.0
  %707 = vmatpush.msra.mxu0 0.0
  %708 = vmatpush.msra.mxu0 0.0
  %709 = vmatpush.msra.mxu0 %v39
  %710 = vmatpush.msra.mxu0 %v38
  %711 = vmatpush.msra.mxu0 %v37
  %712 = vmatpush.msra.mxu0 %v36
  %713 = vmatmul.f32.gmra.mxu0 %v695
  %v714 = vpop.f32.mrf.mxu0
  %v715 = vadd.f32 0.0, %v714
  %716 = vdwg.mxu0
  %v717 = vadd.f32 %v336, %v715
  %v718 = vxor.u32 %v717, 2147483648
  %v719 = vmul.f32 %v718, 1.442695
  %v720 = vpow.pop %v719
  %v721 = vadd.f32 %v720, 1.0
  %v722 = vrcp.pop %v721
  %v723 = vmul.f32 %v721, %v722
  %v724 = vsub.f32 1.0, %v723
  %v725 = vmul.f32 %v722, %v724
  %v726 = vadd.f32 %v722, %v725
  %vm727 = vweird.f32 %v721
  %vm728 = vweird.f32 %v722
  %vm729 = vmor %vm727, %vm728
  %v730 = vsel %vm729, %v722, %v726
  %v731 = vand.u32 2147483647, %v721
  %vm732 = vcmp.eq.f32.partialorder %v731, 8.507059e+37
  %v733 = vand.u32 %v721, 2147483648
  %v734 = vor.u32 1.1754944e-38, %v733
  %v735 = vsel %vm732, %v734, %v730
  %v736 = vmul.f32 1.0, %v735
  %v737 = vtanh.pop %v717
  %v739 = vrot.slane %v679, 6
  %v741 = vmul.f32 %v736, %v739
  %743 = vrot.lane.b32.xlu0 %v737, 64
  %v744 = vpop.permute.xlu0 %743
  %v746 = vmul.f32 %v736, %v744
  %748 = vrot.lane.b32.xlu0 %v746, 32
  %v749 = vpop.permute.xlu0 %748
  %v751 = vadd.f32 %v741, %v749
  %v752 = vtanh.pop %v751
  %754 = vrot.lane.b32.xlu0 %v752, 64
  %v755 = vpop.permute.xlu0 %754
  %v757 = vmul.f32 %v736, %v755
  %759 = vrot.lane.b32.xlu0 %v757, 32
  %v760 = vpop.permute.xlu0 %759
  %762 = vst.msk [vmem:[#allocation2 + $0xa] sm:$0x3] %vm403, %v760
  %v763 = vsel %vm283, %v760, 0
  %765 = vmatpush.msra.mxu0 0.0
  %766 = vmatpush.msra.mxu0 0.0
  %767 = vmatpush.msra.mxu0 0.0
  %768 = vmatpush.msra.mxu0 0.0
  %769 = vmatpush.msra.mxu0 0.0
  %770 = vmatpush.msra.mxu0 0.0
  %771 = vmatpush.msra.mxu0 0.0
  %772 = vmatpush.msra.mxu0 0.0
  %773 = vmatpush.msra.mxu0 0.0
  %774 = vmatpush.msra.mxu0 0.0
  %775 = vmatpush.msra.mxu0 0.0
  %776 = vmatpush.msra.mxu0 0.0
  %777 = vmatpush.msra.mxu0 %v39
  %778 = vmatpush.msra.mxu0 %v38
  %779 = vmatpush.msra.mxu0 %v37
  %780 = vmatpush.msra.mxu0 %v36
  %781 = vmatmul.f32.gmra.mxu0 %v763
  %v782 = vpop.f32.mrf.mxu0
  %v783 = vadd.f32 0.0, %v782
  %784 = vdwg.mxu0
  %v786 = vrot.slane %v783, 6
  %v788 = vadd.f32 %v336, %v786
  %v789 = vxor.u32 %v788, 2147483648
  %v790 = vmul.f32 %v789, 1.442695
  %v791 = vpow.pop %v790
  %v792 = vadd.f32 %v791, 1.0
  %v793 = vrcp.pop %v792
  %v794 = vmul.f32 %v792, %v793
  %v795 = vsub.f32 1.0, %v794
  %v796 = vmul.f32 %v793, %v795
  %v797 = vadd.f32 %v793, %v796
  %vm798 = vweird.f32 %v792
  %vm799 = vweird.f32 %v793
  %vm800 = vmor %vm798, %vm799
  %v801 = vsel %vm800, %v793, %v797
  %v802 = vand.u32 2147483647, %v792
  %vm803 = vcmp.eq.f32.partialorder %v802, 8.507059e+37
  %v804 = vand.u32 %v792, 2147483648
  %v805 = vor.u32 1.1754944e-38, %v804
  %v806 = vsel %vm803, %v805, %v801
  %v807 = vmul.f32 1.0, %v806
  %v808 = vtanh.pop %v788
  %v810 = vrot.slane %v751, 6
  %v812 = vmul.f32 %v807, %v810
  %814 = vrot.lane.b32.xlu0 %v808, 64
  %v815 = vpop.permute.xlu0 %814
  %v817 = vmul.f32 %v807, %v815
  %819 = vrot.lane.b32.xlu0 %v817, 32
  %v820 = vpop.permute.xlu0 %819
  %v822 = vadd.f32 %v812, %v820
  %v823 = vtanh.pop %v822
  %825 = vrot.lane.b32.xlu0 %v823, 64
  %v826 = vpop.permute.xlu0 %825
  %v828 = vmul.f32 %v807, %v826
  %830 = vrot.lane.b32.xlu0 %v828, 32
  %v831 = vpop.permute.xlu0 %830
  %833 = vst.msk [vmem:[#allocation2 + $0xa] sm:$0xc] %vm540, %v831
  %v834 = vrot.slane %v828, 2
  %835 = vrot.lane.b32.xlu0 %v834, 32
  %v836 = vpop.permute.xlu0 %835
  %v837 = vsel %vm283, %v836, 0
  %839 = vmatpush.msra.mxu0 0.0
  %840 = vmatpush.msra.mxu0 0.0
  %841 = vmatpush.msra.mxu0 0.0
  %842 = vmatpush.msra.mxu0 0.0
  %843 = vmatpush.msra.mxu0 0.0
  %844 = vmatpush.msra.mxu0 0.0
  %845 = vmatpush.msra.mxu0 0.0
  %846 = vmatpush.msra.mxu0 0.0
  %847 = vmatpush.msra.mxu0 0.0
  %848 = vmatpush.msra.mxu0 0.0
  %849 = vmatpush.msra.mxu0 0.0
  %850 = vmatpush.msra.mxu0 0.0
  %851 = vmatpush.msra.mxu0 %v39
  %852 = vmatpush.msra.mxu0 %v38
  %853 = vmatpush.msra.mxu0 %v37
  %854 = vmatpush.msra.mxu0 %v36
  %855 = vmatmul.f32.gmra.mxu0 %v837
  %v856 = vpop.f32.mrf.mxu0
  %v857 = vadd.f32 0.0, %v856
  %858 = vdwg.mxu0
  %v860 = vrot.slane %v857, 4
  %v862 = vadd.f32 %v336, %v860
  %v863 = vxor.u32 %v862, 2147483648
  %v864 = vmul.f32 %v863, 1.442695
  %v865 = vpow.pop %v864
  %v866 = vadd.f32 %v865, 1.0
  %v867 = vrcp.pop %v866
  %v868 = vmul.f32 %v866, %v867
  %v869 = vsub.f32 1.0, %v868
  %v870 = vmul.f32 %v867, %v869
  %v871 = vadd.f32 %v867, %v870
  %vm872 = vweird.f32 %v866
  %vm873 = vweird.f32 %v867
  %vm874 = vmor %vm872, %vm873
  %v875 = vsel %vm874, %v867, %v871
  %v876 = vand.u32 2147483647, %v866
  %vm877 = vcmp.eq.f32.partialorder %v876, 8.507059e+37
  %v878 = vand.u32 %v866, 2147483648
  %v879 = vor.u32 1.1754944e-38, %v878
  %v880 = vsel %vm877, %v879, %v875
  %v881 = vmul.f32 1.0, %v880
  %v882 = vtanh.pop %v862
  %v884 = vrot.slane %v822, 6
  %v886 = vmul.f32 %v881, %v884
  %888 = vrot.lane.b32.xlu0 %v882, 64
  %v889 = vpop.permute.xlu0 %888
  %v891 = vmul.f32 %v881, %v889
  %893 = vrot.lane.b32.xlu0 %v891, 32
  %v894 = vpop.permute.xlu0 %893
  %v896 = vadd.f32 %v886, %v894
  %v897 = vtanh.pop %v896
  %899 = vrot.lane.b32.xlu0 %v897, 64
  %v900 = vpop.permute.xlu0 %899
  %v902 = vmul.f32 %v881, %v900
  %904 = vrot.lane.b32.xlu0 %v902, 32
  %v905 = vpop.permute.xlu0 %904
  %907 = vst.msk [vmem:[#allocation2 + $0xa] sm:$0x30] %vm615, %v905
  %v908 = vrot.slane %v902, 4
  %909 = vrot.lane.b32.xlu0 %v908, 32
  %v910 = vpop.permute.xlu0 %909
  %v911 = vsel %vm283, %v910, 0
  %913 = vmatpush.msra.mxu0 0.0
  %914 = vmatpush.msra.mxu0 0.0
  %915 = vmatpush.msra.mxu0 0.0
  %916 = vmatpush.msra.mxu0 0.0
  %917 = vmatpush.msra.mxu0 0.0
  %918 = vmatpush.msra.mxu0 0.0
  %919 = vmatpush.msra.mxu0 0.0
  %920 = vmatpush.msra.mxu0 0.0
  %921 = vmatpush.msra.mxu0 0.0
  %922 = vmatpush.msra.mxu0 0.0
  %923 = vmatpush.msra.mxu0 0.0
  %924 = vmatpush.msra.mxu0 0.0
  %925 = vmatpush.msra.mxu0 %v39
  %926 = vmatpush.msra.mxu0 %v38
  %927 = vmatpush.msra.mxu0 %v37
  %928 = vmatpush.msra.mxu0 %v36
  %929 = vmatmul.f32.gmra.mxu0 %v911
  %v930 = vpop.f32.mrf.mxu0
  %v931 = vadd.f32 0.0, %v930
  %932 = vdwg.mxu0
  %v934 = vrot.slane %v931, 2
  %v936 = vadd.f32 %v336, %v934
  %v937 = vxor.u32 %v936, 2147483648
  %v938 = vmul.f32 %v937, 1.442695
  %v939 = vpow.pop %v938
  %v940 = vadd.f32 %v939, 1.0
  %v941 = vrcp.pop %v940
  %v942 = vmul.f32 %v940, %v941
  %v943 = vsub.f32 1.0, %v942
  %v944 = vmul.f32 %v941, %v943
  %v945 = vadd.f32 %v941, %v944
  %vm946 = vweird.f32 %v940
  %vm947 = vweird.f32 %v941
  %vm948 = vmor %vm946, %vm947
  %v949 = vsel %vm948, %v941, %v945
  %v950 = vand.u32 2147483647, %v940
  %vm951 = vcmp.eq.f32.partialorder %v950, 8.507059e+37
  %v952 = vand.u32 %v940, 2147483648
  %v953 = vor.u32 1.1754944e-38, %v952
  %v954 = vsel %vm951, %v953, %v949
  %v955 = vmul.f32 1.0, %v954
  %v956 = vtanh.pop %v936
  %v958 = vrot.slane %v896, 6
  %v960 = vmul.f32 %v955, %v958
  %962 = vrot.lane.b32.xlu0 %v956, 64
  %v963 = vpop.permute.xlu0 %962
  %v965 = vmul.f32 %v955, %v963
  %967 = vrot.lane.b32.xlu0 %v965, 32
  %v968 = vpop.permute.xlu0 %967
  %v970 = vadd.f32 %v960, %v968
  %v971 = vtanh.pop %v970
  %973 = vrot.lane.b32.xlu0 %v971, 64
  %v974 = vpop.permute.xlu0 %973
  %v976 = vmul.f32 %v955, %v974
  %978 = vrot.lane.b32.xlu0 %v976, 32
  %v979 = vpop.permute.xlu0 %978
  %981 = vst.msk [vmem:[#allocation2 + $0xa] sm:$0xc0] %vm690, %v979
  %v982 = vld [vmem:[#allocation2] sm:$0xff]
  %v983 = vld [vmem:[#allocation2 + $0x8] sm:$0xff]
  %v984 = vld [vmem:[#allocation2 + $0x10] sm:$0x3]
  %v985 = vld [vmem:[%s7] sm:$0xff]
  %v986 = vld [vmem:[%s7 + $0x8] sm:$0xff]
  %v987 = vld [vmem:[%s7 + $0x10] sm:$0xff]
  %v988 = vld [vmem:[%s7 + $0x18] sm:$0xff]
  %v989 = vld [vmem:[%s8] sm:$0x1]
  %v991 = vperm.slane %v989, 0
  %v994 = vsel %vm283, %v982, 0
  %v997 = vsel %vm283, %v983, 0
  %v1000 = vsel %vm283, %v984, 0
  %1002 = vmatpush.msra.mxu0 0.0
  %1003 = vmatpush.msra.mxu0 0.0
  %1004 = vmatpush.msra.mxu0 0.0
  %1005 = vmatpush.msra.mxu0 0.0
  %1006 = vmatpush.msra.mxu0 0.0
  %1007 = vmatpush.msra.mxu0 0.0
  %1008 = vmatpush.msra.mxu0 0.0
  %1009 = vmatpush.msra.mxu0 0.0
  %1010 = vmatpush.msra.mxu0 0.0
  %1011 = vmatpush.msra.mxu0 0.0
  %1012 = vmatpush.msra.mxu0 0.0
  %1013 = vmatpush.msra.mxu0 0.0
  %1014 = vmatpush.msra.mxu0 %v988
  %1015 = vmatpush.msra.mxu0 %v987
  %1016 = vmatpush.msra.mxu0 %v986
  %1017 = vmatpush.msra.mxu0 %v985
  %1018 = vmatmul.f32.gmra.mxu0 %v994
  %v1019 = vpop.f32.mrf.mxu0
  %v1020 = vadd.f32 %v991, %v1019
  %1021 = vmatmul.f32.gmra.mxu0 %v997
  %v1022 = vpop.f32.mrf.mxu0
  %v1023 = vadd.f32 %v991, %v1022
  %1024 = vmatmul.f32.gmra.mxu0 %v1000
  %v1025 = vpop.f32.mrf.mxu0
  %v1026 = vadd.f32 %v991, %v1025
  %1027 = vdwg.mxu0
  %vm1028 = vcmask 523264
  %1029 = vst.msk [vmem:[%s9] sm:$0xff] %vm1028, %v1020
  %1030 = vst.msk [vmem:[%s9 + $0x8] sm:$0xff] %vm1028, %v1023
  %vm1031 = vcmask 517120
  %1032 = vst.msk [vmem:[%s9 + $0x10] sm:$0x3] %vm1031, %v1026
  // Predicated region
  $region38: #{captioner_forward.1} parent=0 // pred_check
    _
  $region39: #{captioner_forward.1} parent=0 // pred_check_branch
    %1034 = sbr.rel (0) target = $region41
  $region40: #{captioner_forward.1} parent=0 // pred_region
    _
  $region41: #{captioner_forward.1} parent=0 // pred_fallthru
    _
  // Predicated region
  $region42: #{captioner_forward.1} parent=0 // pred_check
    _
  $region43: #{captioner_forward.1} parent=0 // pred_check_branch
    %1036 = sbr.rel (0) target = $region45
  $region44: #{captioner_forward.1} parent=0 // pred_region
    _
  $region45: #{captioner_forward.1} parent=0 // pred_fallthru
    _

</llo_original>
